<compile_context>
chip_gen: v7x
topology: tpu7x:2x2x1
jax: 0.10.0
libtpu: 0.0.40
codegen_flags: <defaults>
</compile_context>

<pallas_src>
import functools
import math

import jax
import jax.numpy as jnp
from jax import lax
from jax.experimental import pallas as pl
from jax.experimental.pallas import tpu as pltpu


# ---------------------------------------------------------------------------
# Pass 1: fused QKV projection (rows of x * pre-transposed packed weight)
# ---------------------------------------------------------------------------
def _qkv_proj_kernel(x_ref, w_ref, b_ref, qkv_ref):
    x = x_ref[...].astype(jnp.bfloat16)               # (tm, F)  bf16 operand
    w = w_ref[...]                                    # (F, 3F)  bf16, grid-invariant
    y = jnp.dot(x, w, preferred_element_type=jnp.float32)   # f32 accumulation
    y = y + b_ref[...]                                # (1, 3F) f32 bias
    qkv_ref[...] = y.astype(qkv_ref.dtype)            # one wide lane-dense store


# ---------------------------------------------------------------------------
# Pass 2: flash-style attention, K/V resident per batch, in-kernel kv loop
# ---------------------------------------------------------------------------
def _flash_attn_kernel(q_ref, k_ref, v_ref, o_ref, *, tk):
    q = q_ref[...]                                    # (tq, F) bf16, pre-scaled by 1/sqrt(F)
    tq, feat = q.shape
    n_kv = k_ref.shape[0] // tk                       # static trip count

    def body(i, carry):
        m, l, acc = carry
        start = pl.multiple_of(i * tk, tk)
        k = k_ref[pl.ds(start, tk), :]                # (tk, F) bf16
        v = v_ref[pl.ds(start, tk), :]                # (tk, F) bf16
        # scores = q @ k^T, contracting last axes directly (no transpose).
        s = lax.dot_general(q, k, (((1,), (1,)), ((), ())),
                            preferred_element_type=jnp.float32)   # (tq, tk) f32
        m_new = jnp.maximum(m, jnp.max(s, axis=-1, keepdims=True))
        alpha = jnp.exp(m - m_new)
        p = jnp.exp(s - m_new)                        # f32 softmax math
        l_new = alpha * l + jnp.sum(p, axis=-1, keepdims=True)
        acc_new = alpha * acc + jnp.dot(p.astype(jnp.bfloat16), v,
                                        preferred_element_type=jnp.float32)
        return m_new, l_new, acc_new

    m0 = jnp.full((tq, 1), -jnp.inf, dtype=jnp.float32)
    l0 = jnp.zeros((tq, 1), dtype=jnp.float32)
    acc0 = jnp.zeros((tq, feat), dtype=jnp.float32)
    m, l, acc = lax.fori_loop(0, n_kv, body, (m0, l0, acc0),
                              unroll=(n_kv <= 8))

    inv_l = pl.reciprocal(l, approx=True)             # EUP vrcp; error << tol
    o_ref[...] = (acc * inv_l).astype(o_ref.dtype)


def _pick_tile(n, prefs):
    for p in prefs:
        if n % p == 0:
            return p
    return n   # small/non-aligned fallback: use the full dimension


def self_attention(x, wq, bq, wk, bk, wv, bv, *, tm=None, tq=None, tk=None):
    """x: (B, S, F); wq/wk/wv: (F, F) PyTorch (out,in) layout; bq/bk/bv: (F,)."""
    B, S, F = x.shape
    scale = 1.0 / math.sqrt(F)

    # Pack the three (out,in) weights into one pre-transposed (F, 3F) bf16
    # weight; fold the 1/sqrt(F) softmax scale into the Q columns and Q bias.
    wqkv = jnp.concatenate([wq.T * scale, wk.T, wv.T], axis=1).astype(jnp.bfloat16)
    bqkv = jnp.concatenate([bq * scale, bk, bv]).reshape(1, 3 * F).astype(jnp.float32)

    BS = B * S
    tm = tm or _pick_tile(BS, (512, 256, 128))
    tq = tq or _pick_tile(S, (256, 128))
    tk = tk or _pick_tile(S, (512, 256, 128))
    assert BS % tm == 0 and S % tq == 0 and S % tk == 0

    # ---- Pass 1: fused QKV projection -> packed (BS, 3F) bf16 --------------
    x2d = x.reshape(BS, F)
    qkv = pl.pallas_call(
        _qkv_proj_kernel,
        out_shape=jax.ShapeDtypeStruct((BS, 3 * F), jnp.bfloat16),
        grid_spec=pltpu.PrefetchScalarGridSpec(
            num_scalar_prefetch=0,
            grid=(BS // tm,),
            in_specs=[
                pl.BlockSpec((tm, F), lambda m: (m, 0)),
                pl.BlockSpec((F, 3 * F), lambda m: (0, 0)),   # grid-invariant
                pl.BlockSpec((1, 3 * F), lambda m: (0, 0)),   # grid-invariant
            ],
            out_specs=pl.BlockSpec((tm, 3 * F), lambda m: (m, 0)),
        ),
        compiler_params=pltpu.CompilerParams(dimension_semantics=("parallel",)),
    )(x2d, wqkv, bqkv)
    qkv = qkv.reshape(B, S, 3 * F)

    # ---- Pass 2: flash attention; K/V DMA'd once per batch -----------------
    kernel = functools.partial(_flash_attn_kernel, tk=tk)
    out = pl.pallas_call(
        kernel,
        out_shape=jax.ShapeDtypeStruct((B, S, F), x.dtype),
        grid_spec=pltpu.PrefetchScalarGridSpec(
            num_scalar_prefetch=0,
            grid=(B, S // tq),
            in_specs=[
                # Q tile: columns [0:F) of the packed (B, S, 3F) array.
                pl.BlockSpec((None, tq, F), lambda b, qi: (b, qi, 0)),
                # K: full sequence, columns [F:2F); index_map ignores qi so the
                # block is fetched once per batch and stays resident in VMEM.
                pl.BlockSpec((None, S, F), lambda b, qi: (b, 0, 1)),
                # V: full sequence, columns [2F:3F).
                pl.BlockSpec((None, S, F), lambda b, qi: (b, 0, 2)),
            ],
            out_specs=pl.BlockSpec((None, tq, F), lambda b, qi: (b, qi, 0)),
        ),
        compiler_params=pltpu.CompilerParams(
            dimension_semantics=("parallel", "parallel")),
    )(qkv, qkv, qkv)
    return out


def _reference(x, wq, bq, wk, bk, wv, bv):
    # Pure-JAX f32 reference mirroring the PyTorch forward.
    q = x @ wq.T + bq
    k = x @ wk.T + bk
    v = x @ wv.T + bv
    scores = (q @ jnp.swapaxes(k, -2, -1)) / (x.shape[-1] ** 0.5)
    attn = jax.nn.softmax(scores, axis=-1)
    return attn @ v


if __name__ == "__main__":
    # F = 128 keeps every block lane-dense; S = 256 exercises multiple kv
    # chunks in the in-kernel flash loop and multiple pass-1 row tiles.
    B, S, F = 2, 256, 128
    key = jax.random.PRNGKey(0)
    kx, kwq, kbq, kwk, kbk, kwv, kbv = jax.random.split(key, 7)

    x = jax.random.normal(kx, (B, S, F), dtype=jnp.float32)

    # ~ PyTorch nn.Linear init: uniform(-1/sqrt(F), 1/sqrt(F))
    bound = 1.0 / (F ** 0.5)
    wq = jax.random.uniform(kwq, (F, F), jnp.float32, -bound, bound)
    bq = jax.random.uniform(kbq, (F,), jnp.float32, -bound, bound)
    wk = jax.random.uniform(kwk, (F, F), jnp.float32, -bound, bound)
    bk = jax.random.uniform(kbk, (F,), jnp.float32, -bound, bound)
    wv = jax.random.uniform(kwv, (F, F), jnp.float32, -bound, bound)
    bv = jax.random.uniform(kbv, (F,), jnp.float32, -bound, bound)

    out = self_attention(x, wq, bq, wk, bk, wv, bv)
    out = jax.block_until_ready(out)

    ref = _reference(x, wq, bq, wk, bk, wv, bv)
    assert out.shape == (B, S, F)
    # bf16 MXU operands (standard flash-attention practice) vs. all-f32 ref.
    assert jnp.allclose(out, ref, atol=1e-2, rtol=1e-2), "mismatch vs reference"

    print("KERNEL_OK")
</pallas_src>

<mosaic_0001>
module attributes {stable_mosaic.version = 11 : i64} {
  func.func @_qkv_proj_kernel(%arg0: i32, %arg1: memref<512x128xf32, #tpu.memory_space<vmem>>, %arg2: memref<128x384xbf16, #tpu.memory_space<vmem>>, %arg3: memref<1x384xf32, #tpu.memory_space<vmem>>, %arg4: memref<512x384xbf16, #tpu.memory_space<vmem>>) attributes {dimension_semantics = [#tpu.dimension_semantics<parallel>], iteration_bounds = array<i64: 1>, scalar_prefetch = 0 : i64, scratch_operands = 0 : i64, tpu.core_type = #tpu.core_type<tc>, window_params = [{transform_indices = @transform_0, window_bounds = array<i64: 512, 128>}, {pipeline_mode = #tpu.pipeline_mode<synchronous>, transform_indices = @transform_1, window_bounds = array<i64: 128, 384>}, {pipeline_mode = #tpu.pipeline_mode<synchronous>, transform_indices = @transform_2, window_bounds = array<i64: 1, 384>}, {transform_indices = @transform_3, window_bounds = array<i64: 512, 384>}]} {
    %c0 = arith.constant 0 : index
    %c0_0 = arith.constant 0 : index
    %0 = vector.load %arg1[%c0, %c0_0] : memref<512x128xf32, #tpu.memory_space<vmem>>, vector<512x128xf32>
    %1 = arith.truncf %0 : vector<512x128xf32> to vector<512x128xbf16>
    %c0_1 = arith.constant 0 : index
    %c0_2 = arith.constant 0 : index
    %2 = vector.load %arg2[%c0_1, %c0_2] : memref<128x384xbf16, #tpu.memory_space<vmem>>, vector<128x384xbf16>
    %cst = arith.constant dense<0.000000e+00> : vector<512x384xf32>
    %3 = tpu.matmul %1, %2, %cst {dimension_numbers = #tpu.dot_dimension_numbers<[1], [0], [0], [1], [0, 0, 1, 1], [], []>} : vector<512x128xbf16>, vector<128x384xbf16>, vector<512x384xf32> -> vector<512x384xf32>
    %c0_3 = arith.constant 0 : index
    %c0_4 = arith.constant 0 : index
    %4 = vector.load %arg3[%c0_3, %c0_4] : memref<1x384xf32, #tpu.memory_space<vmem>>, vector<1x384xf32>
    %5 = vector.broadcast %4 : vector<1x384xf32> to vector<512x384xf32>
    %6 = arith.addf %3, %5 : vector<512x384xf32>
    %7 = arith.truncf %6 : vector<512x384xf32> to vector<512x384xbf16>
    %c0_5 = arith.constant 0 : index
    %c0_6 = arith.constant 0 : index
    %8 = vector.load %arg4[%c0_5, %c0_6] : memref<512x384xbf16, #tpu.memory_space<vmem>>, vector<512x384xbf16>
    tpu.vector_store %arg4[%c0_5, %c0_6], %7 {strides = array<i32>} : memref<512x384xbf16, #tpu.memory_space<vmem>>, vector<512x384xbf16>,
    return
  }
  func.func @transform_0(%arg0: i32) -> (i32, i32) {
    %c0_i32 = arith.constant 0 : i32
    %c0_i32_0 = arith.constant 0 : i32
    return %arg0, %c0_i32 : i32, i32
  }
  func.func @transform_1(%arg0: i32) -> (i32, i32) {
    %c0_i32 = arith.constant 0 : i32
    %c0_i32_0 = arith.constant 0 : i32
    %c0_i32_1 = arith.constant 0 : i32
    return %c0_i32, %c0_i32_0 : i32, i32
  }
  func.func @transform_2(%arg0: i32) -> (i32, i32) {
    %c0_i32 = arith.constant 0 : i32
    %c0_i32_0 = arith.constant 0 : i32
    %c0_i32_1 = arith.constant 0 : i32
    return %c0_i32, %c0_i32_0 : i32, i32
  }
  func.func @transform_3(%arg0: i32) -> (i32, i32) {
    %c0_i32 = arith.constant 0 : i32
    %c0_i32_0 = arith.constant 0 : i32
    return %arg0, %c0_i32 : i32, i32
  }
}

</mosaic_0001>

<llo_original>
// kernel: tpu_custom_call.1
$region0: #{tpu_custom_call.1}
  #allocation0 [shape = 'u32[]', space=smem, size = 0x4, offset = 0x4, fixed_abs, tag = 'smem constant byte address 0x4 - core index']
  #allocation1 [shape = 'u32[144,128]{1,0:T(1,128)}', space=vmem, size = 0x12000, scoped, tag = 'internal scratch']
  %s0 = inlined_call_operand.hbm [shape: f32[512,128], index: 0, kind: input, shape index: {}]
  %s1 = inlined_call_operand.hbm [shape: bf16[128,384], index: 1, kind: input, shape index: {}]
  %s2 = inlined_call_operand.vmem [shape: f32[1,384], index: 2, kind: input, shape index: {}]
  %s3 = inlined_call_operand.hbm [shape: bf16[512,384], index: 3, kind: output, shape index: {}]
  %s4 = sld [smem:[#allocation0]]
  $region30: #{tpu_custom_call.1} parent=0
    _
  %s6 = ssub.s32 1, %s4
  %s7 = scalar_select 0, %s6, %s4
  $region1: #{tpu_custom_call.1} parent=0
    #allocation2 [shape = 'u8[262144]{0}', space=vmem, size = 0x40000, scoped, tag = 'input window, operand 0, single buffered']
    #allocation3 [shape = 's32[1]{0}', space=sflag, size = 0x4, scoped, tag = 'scoped memory for tpu_custom_call.1']
    #allocation4 [shape = 's32[1]{0}', space=sflag, size = 0x4, scoped, tag = 'scoped memory for tpu_custom_call.1']
    #allocation5 [shape = 'u8[98304]{0}', space=vmem, size = 0x18000, scoped, tag = 'input window, operand 1, single buffered']
    #allocation6 [shape = 's32[1]{0}', space=sflag, size = 0x4, scoped, tag = 'scoped memory for tpu_custom_call.1']
    #allocation7 [shape = 'u8[393216]{0}', space=vmem, size = 0x60000, scoped, tag = 'output window, operand 0, single buffered']
    %8 = vsyncpa [#allocation3], 0
    %9 = vsyncpa [#allocation6], 0
    %10 = vsyncpa [#allocation4], 0
    // Predicated region
    $region2: #{tpu_custom_call.1} parent=1 // pred_check
      _
    $region3: #{tpu_custom_call.1} parent=1 // pred_check_branch
      %12 = sbr.rel (0) target = $region5
    $region4: #{tpu_custom_call.1} parent=1 // pred_region
      %s14 = ssub.s32 8192, 8192
      %15 = vsyncadd [#allocation3], %s14
      %s16 = sshll.u32 [#allocation2], 4
      %s17 = int_to_ptr.vmem [resolvable:$true] %s16
      %22 = dma.hbm_to_vmem [thread:$0]  %s0, 8192, %s17, [#allocation3], 128, 128, 8
    $region5: #{tpu_custom_call.1} parent=1 // pred_fallthru
      _
    // Predicated region
    $region6: #{tpu_custom_call.1} parent=1 // pred_check
      _
    $region7: #{tpu_custom_call.1} parent=1 // pred_check_branch
      %24 = sbr.rel (0) target = $region9
    $region8: #{tpu_custom_call.1} parent=1 // pred_region
      %s26 = ssub.s32 3072, 3072
      %27 = vsyncadd [#allocation6], %s26
      %s28 = sshll.u32 [#allocation5], 4
      %s29 = int_to_ptr.vmem [resolvable:$true] %s28
      %34 = dma.hbm_to_vmem [thread:$0]  %s1, 3072, %s29, [#allocation6], 192, 192, 12
    $region9: #{tpu_custom_call.1} parent=1 // pred_fallthru
      _
    // Predicated region
    $region10: #{tpu_custom_call.1} parent=1 // pred_check
      _
    $region11: #{tpu_custom_call.1} parent=1 // pred_check_branch
      %36 = sbr.rel (0) target = $region13
    $region12: #{tpu_custom_call.1} parent=1 // pred_region
      _
    $region13: #{tpu_custom_call.1} parent=1 // pred_fallthru
      _
    // Predicated region
    $region14: #{tpu_custom_call.1} parent=1 // pred_check
      _
    $region15: #{tpu_custom_call.1} parent=1 // pred_check_branch
      %38 = sbr.rel (0) target = $region17
    $region16: #{tpu_custom_call.1} parent=1 // pred_region
      %39 = dma.done [#allocation3], 8192
    $region17: #{tpu_custom_call.1} parent=1 // pred_fallthru
      _
    // Predicated region
    $region18: #{tpu_custom_call.1} parent=1 // pred_check
      _
    $region19: #{tpu_custom_call.1} parent=1 // pred_check_branch
      %41 = sbr.rel (0) target = $region21
    $region20: #{tpu_custom_call.1} parent=1 // pred_region
      %42 = dma.done [#allocation6], 3072
    $region21: #{tpu_custom_call.1} parent=1 // pred_fallthru
      _
    %v44 = vld [vmem:[#allocation2] sm:$0xff]
    %v45 = vld [vmem:[#allocation2 + $0x8] sm:$0xff]
    %v46 = vld [vmem:[#allocation2 + $0x10] sm:$0xff]
    %v47 = vld [vmem:[#allocation2 + $0x18] sm:$0xff]
    %v48 = vld [vmem:[#allocation2 + $0x20] sm:$0xff]
    %v49 = vld [vmem:[#allocation2 + $0x28] sm:$0xff]
    %v50 = vld [vmem:[#allocation2 + $0x30] sm:$0xff]
    %v51 = vld [vmem:[#allocation2 + $0x38] sm:$0xff]
    %v52 = vld [vmem:[#allocation2 + $0x40] sm:$0xff]
    %v53 = vld [vmem:[#allocation2 + $0x48] sm:$0xff]
    %v54 = vld [vmem:[#allocation2 + $0x50] sm:$0xff]
    %v55 = vld [vmem:[#allocation2 + $0x58] sm:$0xff]
    %v56 = vld [vmem:[#allocation2 + $0x60] sm:$0xff]
    %v57 = vld [vmem:[#allocation2 + $0x68] sm:$0xff]
    %v58 = vld [vmem:[#allocation2 + $0x70] sm:$0xff]
    %v59 = vld [vmem:[#allocation2 + $0x78] sm:$0xff]
    %v60 = vld [vmem:[#allocation2 + $0x80] sm:$0xff]
    %v61 = vld [vmem:[#allocation2 + $0x88] sm:$0xff]
    %v62 = vld [vmem:[#allocation2 + $0x90] sm:$0xff]
    %v63 = vld [vmem:[#allocation2 + $0x98] sm:$0xff]
    %v64 = vld [vmem:[#allocation2 + $0xa0] sm:$0xff]
    %v65 = vld [vmem:[#allocation2 + $0xa8] sm:$0xff]
    %v66 = vld [vmem:[#allocation2 + $0xb0] sm:$0xff]
    %v67 = vld [vmem:[#allocation2 + $0xb8] sm:$0xff]
    %v68 = vld [vmem:[#allocation2 + $0xc0] sm:$0xff]
    %v69 = vld [vmem:[#allocation2 + $0xc8] sm:$0xff]
    %v70 = vld [vmem:[#allocation2 + $0xd0] sm:$0xff]
    %v71 = vld [vmem:[#allocation2 + $0xd8] sm:$0xff]
    %v72 = vld [vmem:[#allocation2 + $0xe0] sm:$0xff]
    %v73 = vld [vmem:[#allocation2 + $0xe8] sm:$0xff]
    %v74 = vld [vmem:[#allocation2 + $0xf0] sm:$0xff]
    %v75 = vld [vmem:[#allocation2 + $0xf8] sm:$0xff]
    %v76 = vld [vmem:[#allocation2 + $0x100] sm:$0xff]
    %v77 = vld [vmem:[#allocation2 + $0x108] sm:$0xff]
    %v78 = vld [vmem:[#allocation2 + $0x110] sm:$0xff]
    %v79 = vld [vmem:[#allocation2 + $0x118] sm:$0xff]
    %v80 = vld [vmem:[#allocation2 + $0x120] sm:$0xff]
    %v81 = vld [vmem:[#allocation2 + $0x128] sm:$0xff]
    %v82 = vld [vmem:[#allocation2 + $0x130] sm:$0xff]
    %v83 = vld [vmem:[#allocation2 + $0x138] sm:$0xff]
    %v84 = vld [vmem:[#allocation2 + $0x140] sm:$0xff]
    %v85 = vld [vmem:[#allocation2 + $0x148] sm:$0xff]
    %v86 = vld [vmem:[#allocation2 + $0x150] sm:$0xff]
    %v87 = vld [vmem:[#allocation2 + $0x158] sm:$0xff]
    %v88 = vld [vmem:[#allocation2 + $0x160] sm:$0xff]
    %v89 = vld [vmem:[#allocation2 + $0x168] sm:$0xff]
    %v90 = vld [vmem:[#allocation2 + $0x170] sm:$0xff]
    %v91 = vld [vmem:[#allocation2 + $0x178] sm:$0xff]
    %v92 = vld [vmem:[#allocation2 + $0x180] sm:$0xff]
    %v93 = vld [vmem:[#allocation2 + $0x188] sm:$0xff]
    %v94 = vld [vmem:[#allocation2 + $0x190] sm:$0xff]
    %v95 = vld [vmem:[#allocation2 + $0x198] sm:$0xff]
    %v96 = vld [vmem:[#allocation2 + $0x1a0] sm:$0xff]
    %v97 = vld [vmem:[#allocation2 + $0x1a8] sm:$0xff]
    %v98 = vld [vmem:[#allocation2 + $0x1b0] sm:$0xff]
    %v99 = vld [vmem:[#allocation2 + $0x1b8] sm:$0xff]
    %v100 = vld [vmem:[#allocation2 + $0x1c0] sm:$0xff]
    %v101 = vld [vmem:[#allocation2 + $0x1c8] sm:$0xff]
    %v102 = vld [vmem:[#allocation2 + $0x1d0] sm:$0xff]
    %v103 = vld [vmem:[#allocation2 + $0x1d8] sm:$0xff]
    %v104 = vld [vmem:[#allocation2 + $0x1e0] sm:$0xff]
    %v105 = vld [vmem:[#allocation2 + $0x1e8] sm:$0xff]
    %v106 = vld [vmem:[#allocation2 + $0x1f0] sm:$0xff]
    %v107 = vld [vmem:[#allocation2 + $0x1f8] sm:$0xff]
    %v108 = vpack.c.bf16 %v45, %v44
    %v109 = vpack.c.bf16 %v47, %v46
    %v110 = vpack.c.bf16 %v49, %v48
    %v111 = vpack.c.bf16 %v51, %v50
    %v112 = vpack.c.bf16 %v53, %v52
    %v113 = vpack.c.bf16 %v55, %v54
    %v114 = vpack.c.bf16 %v57, %v56
    %v115 = vpack.c.bf16 %v59, %v58
    %v116 = vpack.c.bf16 %v61, %v60
    %v117 = vpack.c.bf16 %v63, %v62
    %v118 = vpack.c.bf16 %v65, %v64
    %v119 = vpack.c.bf16 %v67, %v66
    %v120 = vpack.c.bf16 %v69, %v68
    %v121 = vpack.c.bf16 %v71, %v70
    %v122 = vpack.c.bf16 %v73, %v72
    %v123 = vpack.c.bf16 %v75, %v74
    %v124 = vpack.c.bf16 %v77, %v76
    %v125 = vpack.c.bf16 %v79, %v78
    %v126 = vpack.c.bf16 %v81, %v80
    %v127 = vpack.c.bf16 %v83, %v82
    %v128 = vpack.c.bf16 %v85, %v84
    %v129 = vpack.c.bf16 %v87, %v86
    %v130 = vpack.c.bf16 %v89, %v88
    %v131 = vpack.c.bf16 %v91, %v90
    %v132 = vpack.c.bf16 %v93, %v92
    %v133 = vpack.c.bf16 %v95, %v94
    %v134 = vpack.c.bf16 %v97, %v96
    %v135 = vpack.c.bf16 %v99, %v98
    %v136 = vpack.c.bf16 %v101, %v100
    %v137 = vpack.c.bf16 %v103, %v102
    %v138 = vpack.c.bf16 %v105, %v104
    %v139 = vpack.c.bf16 %v107, %v106
    %v140 = vld [vmem:[#allocation5] sm:$0xff]
    %v141 = vld [vmem:[#allocation5 + $0x8] sm:$0xf]
    %v142 = vld [vmem:[#allocation5 + $0xc] sm:$0xff]
    %v143 = vld [vmem:[#allocation5 + $0x14] sm:$0xf]
    %v144 = vld [vmem:[#allocation5 + $0x18] sm:$0xff]
    %v145 = vld [vmem:[#allocation5 + $0x20] sm:$0xf]
    %v146 = vld [vmem:[#allocation5 + $0x24] sm:$0xff]
    %v147 = vld [vmem:[#allocation5 + $0x2c] sm:$0xf]
    %v148 = vld [vmem:[#allocation5 + $0x30] sm:$0xff]
    %v149 = vld [vmem:[#allocation5 + $0x38] sm:$0xf]
    %v150 = vld [vmem:[#allocation5 + $0x3c] sm:$0xff]
    %v151 = vld [vmem:[#allocation5 + $0x44] sm:$0xf]
    %v152 = vld [vmem:[#allocation5 + $0x48] sm:$0xff]
    %v153 = vld [vmem:[#allocation5 + $0x50] sm:$0xf]
    %v154 = vld [vmem:[#allocation5 + $0x54] sm:$0xff]
    %v155 = vld [vmem:[#allocation5 + $0x5c] sm:$0xf]
    %v156 = vld [vmem:[#allocation5 + $0x60] sm:$0xff]
    %v157 = vld [vmem:[#allocation5 + $0x68] sm:$0xf]
    %v158 = vld [vmem:[#allocation5 + $0x6c] sm:$0xff]
    %v159 = vld [vmem:[#allocation5 + $0x74] sm:$0xf]
    %v160 = vld [vmem:[#allocation5 + $0x78] sm:$0xff]
    %v161 = vld [vmem:[#allocation5 + $0x80] sm:$0xf]
    %v162 = vld [vmem:[#allocation5 + $0x84] sm:$0xff]
    %v163 = vld [vmem:[#allocation5 + $0x8c] sm:$0xf]
    %v164 = vld [vmem:[#allocation5 + $0x90] sm:$0xff]
    %v165 = vld [vmem:[#allocation5 + $0x98] sm:$0xf]
    %v166 = vld [vmem:[#allocation5 + $0x9c] sm:$0xff]
    %v167 = vld [vmem:[#allocation5 + $0xa4] sm:$0xf]
    %v168 = vld [vmem:[#allocation5 + $0xa8] sm:$0xff]
    %v169 = vld [vmem:[#allocation5 + $0xb0] sm:$0xf]
    %v170 = vld [vmem:[#allocation5 + $0xb4] sm:$0xff]
    %v171 = vld [vmem:[#allocation5 + $0xbc] sm:$0xf]
    %v172 = vld [vmem:[%s2] sm:$0x7]
    %v174 = vlaneseq
    %v175 = vshrl.u32 %v174, 7
    %v176 = vsub.s32 0, %v175
    %v177 = vrot.slane %v172, %v176
    %v178 = vlaneseq
    %v179 = vshrl.u32 %v178, 7
    %v180 = vsub.s32 1, %v179
    %v181 = vrot.slane %v172, %v180
    %v182 = vlaneseq
    %v183 = vshrl.u32 %v182, 7
    %v184 = vsub.s32 2, %v183
    %v185 = vrot.slane %v172, %v184
    %v221 = vunpack.c.l.b16 %v140
    %v222 = vunpack.c.h.b16 %v140
    %v223 = vunpack.c.l.b16 %v141
    %v224 = vunpack.c.l.b16 %v142
    %v225 = vunpack.c.h.b16 %v142
    %v226 = vunpack.c.l.b16 %v143
    %v227 = vunpack.c.l.b16 %v144
    %v228 = vunpack.c.h.b16 %v144
    %v229 = vunpack.c.l.b16 %v145
    %v230 = vunpack.c.l.b16 %v146
    %v231 = vunpack.c.h.b16 %v146
    %v232 = vunpack.c.l.b16 %v147
    %v233 = vunpack.c.l.b16 %v148
    %v234 = vunpack.c.h.b16 %v148
    %v235 = vunpack.c.l.b16 %v149
    %v236 = vunpack.c.l.b16 %v150
    %v237 = vunpack.c.h.b16 %v150
    %v238 = vunpack.c.l.b16 %v151
    %v239 = vunpack.c.l.b16 %v152
    %v240 = vunpack.c.h.b16 %v152
    %v241 = vunpack.c.l.b16 %v153
    %v242 = vunpack.c.l.b16 %v154
    %v243 = vunpack.c.h.b16 %v154
    %v244 = vunpack.c.l.b16 %v155
    %v245 = vunpack.c.l.b16 %v156
    %v246 = vunpack.c.h.b16 %v156
    %v247 = vunpack.c.l.b16 %v157
    %v248 = vunpack.c.l.b16 %v158
    %v249 = vunpack.c.h.b16 %v158
    %v250 = vunpack.c.l.b16 %v159
    %v251 = vunpack.c.l.b16 %v160
    %v252 = vunpack.c.h.b16 %v160
    %v253 = vunpack.c.l.b16 %v161
    %v254 = vunpack.c.l.b16 %v162
    %v255 = vunpack.c.h.b16 %v162
    %v256 = vunpack.c.l.b16 %v163
    %v257 = vunpack.c.l.b16 %v164
    %v258 = vunpack.c.h.b16 %v164
    %v259 = vunpack.c.l.b16 %v165
    %v260 = vunpack.c.l.b16 %v166
    %v261 = vunpack.c.h.b16 %v166
    %v262 = vunpack.c.l.b16 %v167
    %v263 = vunpack.c.l.b16 %v168
    %v264 = vunpack.c.h.b16 %v168
    %v265 = vunpack.c.l.b16 %v169
    %v266 = vunpack.c.l.b16 %v170
    %v267 = vunpack.c.h.b16 %v170
    %v268 = vunpack.c.l.b16 %v171
    %v269 = vpack.c.b16 %v224, %v221
    %v270 = vpack.c.b16 %v225, %v222
    %v271 = vpack.c.b16 %v226, %v223
    %v272 = vpack.c.b16 %v230, %v227
    %v273 = vpack.c.b16 %v231, %v228
    %v274 = vpack.c.b16 %v232, %v229
    %v275 = vpack.c.b16 %v236, %v233
    %v276 = vpack.c.b16 %v237, %v234
    %v277 = vpack.c.b16 %v238, %v235
    %v278 = vpack.c.b16 %v242, %v239
    %v279 = vpack.c.b16 %v243, %v240
    %v280 = vpack.c.b16 %v244, %v241
    %v281 = vpack.c.b16 %v248, %v245
    %v282 = vpack.c.b16 %v249, %v246
    %v283 = vpack.c.b16 %v250, %v247
    %v284 = vpack.c.b16 %v254, %v251
    %v285 = vpack.c.b16 %v255, %v252
    %v286 = vpack.c.b16 %v256, %v253
    %v287 = vpack.c.b16 %v260, %v257
    %v288 = vpack.c.b16 %v261, %v258
    %v289 = vpack.c.b16 %v262, %v259
    %v290 = vpack.c.b16 %v266, %v263
    %v291 = vpack.c.b16 %v267, %v264
    %v292 = vpack.c.b16 %v268, %v265
    %317 = vmatprep.subr.bf16.mxu0 %v270
    %318 = vmatpush1.bf16.msra.mxu0 %v269
    %319 = vmatprep.subr.bf16.mxu0 %v273
    %320 = vmatpush1.bf16.msra.mxu0 %v272
    %321 = vmatprep.subr.bf16.mxu0 %v276
    %322 = vmatpush1.bf16.msra.mxu0 %v275
    %323 = vmatprep.subr.bf16.mxu0 %v279
    %324 = vmatpush1.bf16.msra.mxu0 %v278
    %325 = vmatprep.subr.bf16.mxu0 %v282
    %326 = vmatpush1.bf16.msra.mxu0 %v281
    %327 = vmatprep.subr.bf16.mxu0 %v285
    %328 = vmatpush1.bf16.msra.mxu0 %v284
    %329 = vmatprep.subr.bf16.mxu0 %v288
    %330 = vmatpush1.bf16.msra.mxu0 %v287
    %331 = vmatprep.subr.bf16.mxu0 %v291
    %332 = vmatpush1.bf16.msra.mxu0 %v290
    %333 = vmatprep.subr.bf16.mxu0 0
    %334 = vmatpush1.bf16.msra.mxu0 0
    %335 = vmatprep.subr.bf16.mxu0 0
    %336 = vmatpush1.bf16.msra.mxu0 0
    %337 = vmatprep.subr.bf16.mxu0 0
    %338 = vmatpush1.bf16.msra.mxu0 0
    %339 = vmatprep.subr.bf16.mxu0 0
    %340 = vmatpush1.bf16.msra.mxu0 0
    %341 = vmatprep.subr.bf16.mxu0 0
    %342 = vmatpush1.bf16.msra.mxu0 0
    %343 = vmatprep.subr.bf16.mxu0 0
    %344 = vmatpush1.bf16.msra.mxu0 0
    %345 = vmatprep.subr.bf16.mxu0 0
    %346 = vmatpush1.bf16.msra.mxu0 0
    %347 = vmatprep.subr.bf16.mxu0 0
    %348 = vmatpush1.bf16.msra.mxu0 0
    %349 = vmatprep.mubr.bf16.mxu0 0
    %350 = vmatmul.mubr.bf16.gmra.mrb[0].mxu0 %v108
    %v351 = vpop.f32.mrb[0].mxu0
    %v352 = vadd.f32 %v177, %v351
    %v353 = vpop.f32.mrb[0].mxu0
    %v354 = vadd.f32 %v181, %v353
    %v355 = vpop.f32.mrb[0].mxu0
    %v356 = vadd.f32 %v177, %v355
    %v357 = vpop.f32.mrb[0].mxu0
    %v358 = vadd.f32 %v181, %v357
    %359 = vmatprep.mubr.bf16.mxu0 0
    %360 = vmatmul.mubr.bf16.gmra.mrb[0].mxu0 %v109
    %v361 = vpop.f32.mrb[0].mxu0
    %v362 = vadd.f32 %v177, %v361
    %v363 = vpop.f32.mrb[0].mxu0
    %v364 = vadd.f32 %v181, %v363
    %v365 = vpop.f32.mrb[0].mxu0
    %v366 = vadd.f32 %v177, %v365
    %v367 = vpop.f32.mrb[0].mxu0
    %v368 = vadd.f32 %v181, %v367
    %369 = vmatprep.mubr.bf16.mxu0 0
    %370 = vmatmul.mubr.bf16.gmra.mrb[0].mxu0 %v110
    %v371 = vpop.f32.mrb[0].mxu0
    %v372 = vadd.f32 %v177, %v371
    %v373 = vpop.f32.mrb[0].mxu0
    %v374 = vadd.f32 %v181, %v373
    %v375 = vpop.f32.mrb[0].mxu0
    %v376 = vadd.f32 %v177, %v375
    %v377 = vpop.f32.mrb[0].mxu0
    %v378 = vadd.f32 %v181, %v377
    %379 = vmatprep.mubr.bf16.mxu0 0
    %380 = vmatmul.mubr.bf16.gmra.mrb[0].mxu0 %v111
    %v381 = vpop.f32.mrb[0].mxu0
    %v382 = vadd.f32 %v177, %v381
    %v383 = vpop.f32.mrb[0].mxu0
    %v384 = vadd.f32 %v181, %v383
    %v385 = vpop.f32.mrb[0].mxu0
    %v386 = vadd.f32 %v177, %v385
    %v387 = vpop.f32.mrb[0].mxu0
    %v388 = vadd.f32 %v181, %v387
    %389 = vmatprep.mubr.bf16.mxu0 0
    %390 = vmatmul.mubr.bf16.gmra.mrb[0].mxu0 %v112
    %v391 = vpop.f32.mrb[0].mxu0
    %v392 = vadd.f32 %v177, %v391
    %v393 = vpop.f32.mrb[0].mxu0
    %v394 = vadd.f32 %v181, %v393
    %v395 = vpop.f32.mrb[0].mxu0
    %v396 = vadd.f32 %v177, %v395
    %v397 = vpop.f32.mrb[0].mxu0
    %v398 = vadd.f32 %v181, %v397
    %399 = vmatprep.mubr.bf16.mxu0 0
    %400 = vmatmul.mubr.bf16.gmra.mrb[0].mxu0 %v113
    %v401 = vpop.f32.mrb[0].mxu0
    %v402 = vadd.f32 %v177, %v401
    %v403 = vpop.f32.mrb[0].mxu0
    %v404 = vadd.f32 %v181, %v403
    %v405 = vpop.f32.mrb[0].mxu0
    %v406 = vadd.f32 %v177, %v405
    %v407 = vpop.f32.mrb[0].mxu0
    %v408 = vadd.f32 %v181, %v407
    %409 = vmatprep.mubr.bf16.mxu0 0
    %410 = vmatmul.mubr.bf16.gmra.mrb[0].mxu0 %v114
    %v411 = vpop.f32.mrb[0].mxu0
    %v412 = vadd.f32 %v177, %v411
    %v413 = vpop.f32.mrb[0].mxu0
    %v414 = vadd.f32 %v181, %v413
    %v415 = vpop.f32.mrb[0].mxu0
    %v416 = vadd.f32 %v177, %v415
    %v417 = vpop.f32.mrb[0].mxu0
    %v418 = vadd.f32 %v181, %v417
    %419 = vmatprep.mubr.bf16.mxu0 0
    %420 = vmatmul.mubr.bf16.gmra.mrb[0].mxu0 %v115
    %v421 = vpop.f32.mrb[0].mxu0
    %v422 = vadd.f32 %v177, %v421
    %v423 = vpop.f32.mrb[0].mxu0
    %v424 = vadd.f32 %v181, %v423
    %v425 = vpop.f32.mrb[0].mxu0
    %v426 = vadd.f32 %v177, %v425
    %v427 = vpop.f32.mrb[0].mxu0
    %v428 = vadd.f32 %v181, %v427
    %429 = vmatprep.mubr.bf16.mxu0 0
    %430 = vmatmul.mubr.bf16.gmra.mrb[0].mxu0 %v116
    %v431 = vpop.f32.mrb[0].mxu0
    %v432 = vadd.f32 %v177, %v431
    %v433 = vpop.f32.mrb[0].mxu0
    %v434 = vadd.f32 %v181, %v433
    %v435 = vpop.f32.mrb[0].mxu0
    %v436 = vadd.f32 %v177, %v435
    %v437 = vpop.f32.mrb[0].mxu0
    %v438 = vadd.f32 %v181, %v437
    %439 = vmatprep.mubr.bf16.mxu0 0
    %440 = vmatmul.mubr.bf16.gmra.mrb[0].mxu0 %v117
    %v441 = vpop.f32.mrb[0].mxu0
    %v442 = vadd.f32 %v177, %v441
    %v443 = vpop.f32.mrb[0].mxu0
    %v444 = vadd.f32 %v181, %v443
    %v445 = vpop.f32.mrb[0].mxu0
    %v446 = vadd.f32 %v177, %v445
    %v447 = vpop.f32.mrb[0].mxu0
    %v448 = vadd.f32 %v181, %v447
    %449 = vmatprep.mubr.bf16.mxu0 0
    %450 = vmatmul.mubr.bf16.gmra.mrb[0].mxu0 %v118
    %v451 = vpop.f32.mrb[0].mxu0
    %v452 = vadd.f32 %v177, %v451
    %v453 = vpop.f32.mrb[0].mxu0
    %v454 = vadd.f32 %v181, %v453
    %v455 = vpop.f32.mrb[0].mxu0
    %v456 = vadd.f32 %v177, %v455
    %v457 = vpop.f32.mrb[0].mxu0
    %v458 = vadd.f32 %v181, %v457
    %459 = vmatprep.mubr.bf16.mxu0 0
    %460 = vmatmul.mubr.bf16.gmra.mrb[0].mxu0 %v119
    %v461 = vpop.f32.mrb[0].mxu0
    %v462 = vadd.f32 %v177, %v461
    %v463 = vpop.f32.mrb[0].mxu0
    %v464 = vadd.f32 %v181, %v463
    %v465 = vpop.f32.mrb[0].mxu0
    %v466 = vadd.f32 %v177, %v465
    %v467 = vpop.f32.mrb[0].mxu0
    %v468 = vadd.f32 %v181, %v467
    %469 = vmatprep.mubr.bf16.mxu0 0
    %470 = vmatmul.mubr.bf16.gmra.mrb[0].mxu0 %v120
    %v471 = vpop.f32.mrb[0].mxu0
    %v472 = vadd.f32 %v177, %v471
    %v473 = vpop.f32.mrb[0].mxu0
    %v474 = vadd.f32 %v181, %v473
    %v475 = vpop.f32.mrb[0].mxu0
    %v476 = vadd.f32 %v177, %v475
    %v477 = vpop.f32.mrb[0].mxu0
    %v478 = vadd.f32 %v181, %v477
    %479 = vmatprep.mubr.bf16.mxu0 0
    %480 = vmatmul.mubr.bf16.gmra.mrb[0].mxu0 %v121
    %v481 = vpop.f32.mrb[0].mxu0
    %v482 = vadd.f32 %v177, %v481
    %v483 = vpop.f32.mrb[0].mxu0
    %v484 = vadd.f32 %v181, %v483
    %v485 = vpop.f32.mrb[0].mxu0
    %v486 = vadd.f32 %v177, %v485
    %v487 = vpop.f32.mrb[0].mxu0
    %v488 = vadd.f32 %v181, %v487
    %489 = vmatprep.mubr.bf16.mxu0 0
    %490 = vmatmul.mubr.bf16.gmra.mrb[0].mxu0 %v122
    %v491 = vpop.f32.mrb[0].mxu0
    %v492 = vadd.f32 %v177, %v491
    %v493 = vpop.f32.mrb[0].mxu0
    %v494 = vadd.f32 %v181, %v493
    %v495 = vpop.f32.mrb[0].mxu0
    %v496 = vadd.f32 %v177, %v495
    %v497 = vpop.f32.mrb[0].mxu0
    %v498 = vadd.f32 %v181, %v497
    %499 = vmatprep.mubr.bf16.mxu0 0
    %500 = vmatmul.mubr.bf16.gmra.mrb[0].mxu0 %v123
    %v501 = vpop.f32.mrb[0].mxu0
    %v502 = vadd.f32 %v177, %v501
    %v503 = vpop.f32.mrb[0].mxu0
    %v504 = vadd.f32 %v181, %v503
    %v505 = vpop.f32.mrb[0].mxu0
    %v506 = vadd.f32 %v177, %v505
    %v507 = vpop.f32.mrb[0].mxu0
    %v508 = vadd.f32 %v181, %v507
    %509 = vmatprep.mubr.bf16.mxu0 0
    %510 = vmatmul.mubr.bf16.gmra.mrb[0].mxu0 %v124
    %v511 = vpop.f32.mrb[0].mxu0
    %v512 = vadd.f32 %v177, %v511
    %v513 = vpop.f32.mrb[0].mxu0
    %v514 = vadd.f32 %v181, %v513
    %v515 = vpop.f32.mrb[0].mxu0
    %v516 = vadd.f32 %v177, %v515
    %v517 = vpop.f32.mrb[0].mxu0
    %v518 = vadd.f32 %v181, %v517
    %519 = vmatprep.mubr.bf16.mxu0 0
    %520 = vmatmul.mubr.bf16.gmra.mrb[0].mxu0 %v125
    %v521 = vpop.f32.mrb[0].mxu0
    %v522 = vadd.f32 %v177, %v521
    %v523 = vpop.f32.mrb[0].mxu0
    %v524 = vadd.f32 %v181, %v523
    %v525 = vpop.f32.mrb[0].mxu0
    %v526 = vadd.f32 %v177, %v525
    %v527 = vpop.f32.mrb[0].mxu0
    %v528 = vadd.f32 %v181, %v527
    %529 = vmatprep.mubr.bf16.mxu0 0
    %530 = vmatmul.mubr.bf16.gmra.mrb[0].mxu0 %v126
    %v531 = vpop.f32.mrb[0].mxu0
    %v532 = vadd.f32 %v177, %v531
    %v533 = vpop.f32.mrb[0].mxu0
    %v534 = vadd.f32 %v181, %v533
    %v535 = vpop.f32.mrb[0].mxu0
    %v536 = vadd.f32 %v177, %v535
    %v537 = vpop.f32.mrb[0].mxu0
    %v538 = vadd.f32 %v181, %v537
    %539 = vmatprep.mubr.bf16.mxu0 0
    %540 = vmatmul.mubr.bf16.gmra.mrb[0].mxu0 %v127
    %v541 = vpop.f32.mrb[0].mxu0
    %v542 = vadd.f32 %v177, %v541
    %v543 = vpop.f32.mrb[0].mxu0
    %v544 = vadd.f32 %v181, %v543
    %v545 = vpop.f32.mrb[0].mxu0
    %v546 = vadd.f32 %v177, %v545
    %v547 = vpop.f32.mrb[0].mxu0
    %v548 = vadd.f32 %v181, %v547
    %549 = vmatprep.mubr.bf16.mxu0 0
    %550 = vmatmul.mubr.bf16.gmra.mrb[0].mxu0 %v128
    %v551 = vpop.f32.mrb[0].mxu0
    %v552 = vadd.f32 %v177, %v551
    %v553 = vpop.f32.mrb[0].mxu0
    %v554 = vadd.f32 %v181, %v553
    %v555 = vpop.f32.mrb[0].mxu0
    %v556 = vadd.f32 %v177, %v555
    %v557 = vpop.f32.mrb[0].mxu0
    %v558 = vadd.f32 %v181, %v557
    %559 = vmatprep.mubr.bf16.mxu0 0
    %560 = vmatmul.mubr.bf16.gmra.mrb[0].mxu0 %v129
    %v561 = vpop.f32.mrb[0].mxu0
    %v562 = vadd.f32 %v177, %v561
    %v563 = vpop.f32.mrb[0].mxu0
    %v564 = vadd.f32 %v181, %v563
    %v565 = vpop.f32.mrb[0].mxu0
    %v566 = vadd.f32 %v177, %v565
    %v567 = vpop.f32.mrb[0].mxu0
    %v568 = vadd.f32 %v181, %v567
    %569 = vmatprep.mubr.bf16.mxu0 0
    %570 = vmatmul.mubr.bf16.gmra.mrb[0].mxu0 %v130
    %v571 = vpop.f32.mrb[0].mxu0
    %v572 = vadd.f32 %v177, %v571
    %v573 = vpop.f32.mrb[0].mxu0
    %v574 = vadd.f32 %v181, %v573
    %v575 = vpop.f32.mrb[0].mxu0
    %v576 = vadd.f32 %v177, %v575
    %v577 = vpop.f32.mrb[0].mxu0
    %v578 = vadd.f32 %v181, %v577
    %579 = vmatprep.mubr.bf16.mxu0 0
    %580 = vmatmul.mubr.bf16.gmra.mrb[0].mxu0 %v131
    %v581 = vpop.f32.mrb[0].mxu0
    %v582 = vadd.f32 %v177, %v581
    %v583 = vpop.f32.mrb[0].mxu0
    %v584 = vadd.f32 %v181, %v583
    %v585 = vpop.f32.mrb[0].mxu0
    %v586 = vadd.f32 %v177, %v585
    %v587 = vpop.f32.mrb[0].mxu0
    %v588 = vadd.f32 %v181, %v587
    %589 = vmatprep.mubr.bf16.mxu0 0
    %590 = vmatmul.mubr.bf16.gmra.mrb[0].mxu0 %v132
    %v591 = vpop.f32.mrb[0].mxu0
    %v592 = vadd.f32 %v177, %v591
    %v593 = vpop.f32.mrb[0].mxu0
    %v594 = vadd.f32 %v181, %v593
    %v595 = vpop.f32.mrb[0].mxu0
    %v596 = vadd.f32 %v177, %v595
    %v597 = vpop.f32.mrb[0].mxu0
    %v598 = vadd.f32 %v181, %v597
    %599 = vmatprep.mubr.bf16.mxu0 0
    %600 = vmatmul.mubr.bf16.gmra.mrb[0].mxu0 %v133
    %v601 = vpop.f32.mrb[0].mxu0
    %v602 = vadd.f32 %v177, %v601
    %v603 = vpop.f32.mrb[0].mxu0
    %v604 = vadd.f32 %v181, %v603
    %v605 = vpop.f32.mrb[0].mxu0
    %v606 = vadd.f32 %v177, %v605
    %v607 = vpop.f32.mrb[0].mxu0
    %v608 = vadd.f32 %v181, %v607
    %609 = vmatprep.mubr.bf16.mxu0 0
    %610 = vmatmul.mubr.bf16.gmra.mrb[0].mxu0 %v134
    %v611 = vpop.f32.mrb[0].mxu0
    %v612 = vadd.f32 %v177, %v611
    %v613 = vpop.f32.mrb[0].mxu0
    %v614 = vadd.f32 %v181, %v613
    %v615 = vpop.f32.mrb[0].mxu0
    %v616 = vadd.f32 %v177, %v615
    %v617 = vpop.f32.mrb[0].mxu0
    %v618 = vadd.f32 %v181, %v617
    %619 = vmatprep.mubr.bf16.mxu0 0
    %620 = vmatmul.mubr.bf16.gmra.mrb[0].mxu0 %v135
    %v621 = vpop.f32.mrb[0].mxu0
    %v622 = vadd.f32 %v177, %v621
    %v623 = vpop.f32.mrb[0].mxu0
    %v624 = vadd.f32 %v181, %v623
    %v625 = vpop.f32.mrb[0].mxu0
    %v626 = vadd.f32 %v177, %v625
    %v627 = vpop.f32.mrb[0].mxu0
    %v628 = vadd.f32 %v181, %v627
    %629 = vmatprep.mubr.bf16.mxu0 0
    %630 = vmatmul.mubr.bf16.gmra.mrb[0].mxu0 %v136
    %v631 = vpop.f32.mrb[0].mxu0
    %v632 = vadd.f32 %v177, %v631
    %v633 = vpop.f32.mrb[0].mxu0
    %v634 = vadd.f32 %v181, %v633
    %v635 = vpop.f32.mrb[0].mxu0
    %v636 = vadd.f32 %v177, %v635
    %v637 = vpop.f32.mrb[0].mxu0
    %v638 = vadd.f32 %v181, %v637
    %639 = vmatprep.mubr.bf16.mxu0 0
    %640 = vmatmul.mubr.bf16.gmra.mrb[0].mxu0 %v137
    %v641 = vpop.f32.mrb[0].mxu0
    %v642 = vadd.f32 %v177, %v641
    %v643 = vpop.f32.mrb[0].mxu0
    %v644 = vadd.f32 %v181, %v643
    %v645 = vpop.f32.mrb[0].mxu0
    %v646 = vadd.f32 %v177, %v645
    %v647 = vpop.f32.mrb[0].mxu0
    %v648 = vadd.f32 %v181, %v647
    %649 = vmatprep.mubr.bf16.mxu0 0
    %650 = vmatmul.mubr.bf16.gmra.mrb[0].mxu0 %v138
    %v651 = vpop.f32.mrb[0].mxu0
    %v652 = vadd.f32 %v177, %v651
    %v653 = vpop.f32.mrb[0].mxu0
    %v654 = vadd.f32 %v181, %v653
    %v655 = vpop.f32.mrb[0].mxu0
    %v656 = vadd.f32 %v177, %v655
    %v657 = vpop.f32.mrb[0].mxu0
    %v658 = vadd.f32 %v181, %v657
    %659 = vmatprep.mubr.bf16.mxu0 0
    %660 = vmatmul.mubr.bf16.gmra.mrb[0].mxu0 %v139
    %v661 = vpop.f32.mrb[0].mxu0
    %v662 = vadd.f32 %v177, %v661
    %v663 = vpop.f32.mrb[0].mxu0
    %v664 = vadd.f32 %v181, %v663
    %v665 = vpop.f32.mrb[0].mxu0
    %v666 = vadd.f32 %v177, %v665
    %v667 = vpop.f32.mrb[0].mxu0
    %v668 = vadd.f32 %v181, %v667
    %669 = vdwg.mxu0
    %670 = vmatprep.subr.bf16.mxu0 0
    %671 = vmatpush1.bf16.msra.mxu0 %v271
    %672 = vmatprep.subr.bf16.mxu0 0
    %673 = vmatpush1.bf16.msra.mxu0 %v274
    %674 = vmatprep.subr.bf16.mxu0 0
    %675 = vmatpush1.bf16.msra.mxu0 %v277
    %676 = vmatprep.subr.bf16.mxu0 0
    %677 = vmatpush1.bf16.msra.mxu0 %v280
    %678 = vmatprep.subr.bf16.mxu0 0
    %679 = vmatpush1.bf16.msra.mxu0 %v283
    %680 = vmatprep.subr.bf16.mxu0 0
    %681 = vmatpush1.bf16.msra.mxu0 %v286
    %682 = vmatprep.subr.bf16.mxu0 0
    %683 = vmatpush1.bf16.msra.mxu0 %v289
    %684 = vmatprep.subr.bf16.mxu0 0
    %685 = vmatpush1.bf16.msra.mxu0 %v292
    %686 = vmatprep.subr.bf16.mxu0 0
    %687 = vmatpush1.bf16.msra.mxu0 0
    %688 = vmatprep.subr.bf16.mxu0 0
    %689 = vmatpush1.bf16.msra.mxu0 0
    %690 = vmatprep.subr.bf16.mxu0 0
    %691 = vmatpush1.bf16.msra.mxu0 0
    %692 = vmatprep.subr.bf16.mxu0 0
    %693 = vmatpush1.bf16.msra.mxu0 0
    %694 = vmatprep.subr.bf16.mxu0 0
    %695 = vmatpush1.bf16.msra.mxu0 0
    %696 = vmatprep.subr.bf16.mxu0 0
    %697 = vmatpush1.bf16.msra.mxu0 0
    %698 = vmatprep.subr.bf16.mxu0 0
    %699 = vmatpush1.bf16.msra.mxu0 0
    %700 = vmatprep.subr.bf16.mxu0 0
    %701 = vmatpush1.bf16.msra.mxu0 0
    %702 = vmatprep.mubr.bf16.mxu0 0
    %703 = vmatmul.mubr.bf16.gmra.mrb[0].mxu0 %v108
    %v704 = vpop.f32.mrb[0].mxu0
    %v705 = vadd.f32 %v185, %v704
    %v706 = vpop.f32.mrb[0].mxu0
    %v707 = vpop.f32.mrb[0].mxu0
    %v708 = vadd.f32 %v185, %v707
    %v709 = vpop.f32.mrb[0].mxu0
    %710 = vmatprep.mubr.bf16.mxu0 0
    %711 = vmatmul.mubr.bf16.gmra.mrb[0].mxu0 %v109
    %v712 = vpop.f32.mrb[0].mxu0
    %v713 = vadd.f32 %v185, %v712
    %v714 = vpop.f32.mrb[0].mxu0
    %v715 = vpop.f32.mrb[0].mxu0
    %v716 = vadd.f32 %v185, %v715
    %v717 = vpop.f32.mrb[0].mxu0
    %718 = vmatprep.mubr.bf16.mxu0 0
    %719 = vmatmul.mubr.bf16.gmra.mrb[0].mxu0 %v110
    %v720 = vpop.f32.mrb[0].mxu0
    %v721 = vadd.f32 %v185, %v720
    %v722 = vpop.f32.mrb[0].mxu0
    %v723 = vpop.f32.mrb[0].mxu0
    %v724 = vadd.f32 %v185, %v723
    %v725 = vpop.f32.mrb[0].mxu0
    %726 = vmatprep.mubr.bf16.mxu0 0
    %727 = vmatmul.mubr.bf16.gmra.mrb[0].mxu0 %v111
    %v728 = vpop.f32.mrb[0].mxu0
    %v729 = vadd.f32 %v185, %v728
    %v730 = vpop.f32.mrb[0].mxu0
    %v731 = vpop.f32.mrb[0].mxu0
    %v732 = vadd.f32 %v185, %v731
    %v733 = vpop.f32.mrb[0].mxu0
    %734 = vmatprep.mubr.bf16.mxu0 0
    %735 = vmatmul.mubr.bf16.gmra.mrb[0].mxu0 %v112
    %v736 = vpop.f32.mrb[0].mxu0
    %v737 = vadd.f32 %v185, %v736
    %v738 = vpop.f32.mrb[0].mxu0
    %v739 = vpop.f32.mrb[0].mxu0
    %v740 = vadd.f32 %v185, %v739
    %v741 = vpop.f32.mrb[0].mxu0
    %742 = vmatprep.mubr.bf16.mxu0 0
    %743 = vmatmul.mubr.bf16.gmra.mrb[0].mxu0 %v113
    %v744 = vpop.f32.mrb[0].mxu0
    %v745 = vadd.f32 %v185, %v744
    %v746 = vpop.f32.mrb[0].mxu0
    %v747 = vpop.f32.mrb[0].mxu0
    %v748 = vadd.f32 %v185, %v747
    %v749 = vpop.f32.mrb[0].mxu0
    %750 = vmatprep.mubr.bf16.mxu0 0
    %751 = vmatmul.mubr.bf16.gmra.mrb[0].mxu0 %v114
    %v752 = vpop.f32.mrb[0].mxu0
    %v753 = vadd.f32 %v185, %v752
    %v754 = vpop.f32.mrb[0].mxu0
    %v755 = vpop.f32.mrb[0].mxu0
    %v756 = vadd.f32 %v185, %v755
    %v757 = vpop.f32.mrb[0].mxu0
    %758 = vmatprep.mubr.bf16.mxu0 0
    %759 = vmatmul.mubr.bf16.gmra.mrb[0].mxu0 %v115
    %v760 = vpop.f32.mrb[0].mxu0
    %v761 = vadd.f32 %v185, %v760
    %v762 = vpop.f32.mrb[0].mxu0
    %v763 = vpop.f32.mrb[0].mxu0
    %v764 = vadd.f32 %v185, %v763
    %v765 = vpop.f32.mrb[0].mxu0
    %766 = vmatprep.mubr.bf16.mxu0 0
    %767 = vmatmul.mubr.bf16.gmra.mrb[0].mxu0 %v116
    %v768 = vpop.f32.mrb[0].mxu0
    %v769 = vadd.f32 %v185, %v768
    %v770 = vpop.f32.mrb[0].mxu0
    %v771 = vpop.f32.mrb[0].mxu0
    %v772 = vadd.f32 %v185, %v771
    %v773 = vpop.f32.mrb[0].mxu0
    %774 = vmatprep.mubr.bf16.mxu0 0
    %775 = vmatmul.mubr.bf16.gmra.mrb[0].mxu0 %v117
    %v776 = vpop.f32.mrb[0].mxu0
    %v777 = vadd.f32 %v185, %v776
    %v778 = vpop.f32.mrb[0].mxu0
    %v779 = vpop.f32.mrb[0].mxu0
    %v780 = vadd.f32 %v185, %v779
    %v781 = vpop.f32.mrb[0].mxu0
    %782 = vmatprep.mubr.bf16.mxu0 0
    %783 = vmatmul.mubr.bf16.gmra.mrb[0].mxu0 %v118
    %v784 = vpop.f32.mrb[0].mxu0
    %v785 = vadd.f32 %v185, %v784
    %v786 = vpop.f32.mrb[0].mxu0
    %v787 = vpop.f32.mrb[0].mxu0
    %v788 = vadd.f32 %v185, %v787
    %v789 = vpop.f32.mrb[0].mxu0
    %790 = vmatprep.mubr.bf16.mxu0 0
    %791 = vmatmul.mubr.bf16.gmra.mrb[0].mxu0 %v119
    %v792 = vpop.f32.mrb[0].mxu0
    %v793 = vadd.f32 %v185, %v792
    %v794 = vpop.f32.mrb[0].mxu0
    %v795 = vpop.f32.mrb[0].mxu0
    %v796 = vadd.f32 %v185, %v795
    %v797 = vpop.f32.mrb[0].mxu0
    %798 = vmatprep.mubr.bf16.mxu0 0
    %799 = vmatmul.mubr.bf16.gmra.mrb[0].mxu0 %v120
    %v800 = vpop.f32.mrb[0].mxu0
    %v801 = vadd.f32 %v185, %v800
    %v802 = vpop.f32.mrb[0].mxu0
    %v803 = vpop.f32.mrb[0].mxu0
    %v804 = vadd.f32 %v185, %v803
    %v805 = vpop.f32.mrb[0].mxu0
    %806 = vmatprep.mubr.bf16.mxu0 0
    %807 = vmatmul.mubr.bf16.gmra.mrb[0].mxu0 %v121
    %v808 = vpop.f32.mrb[0].mxu0
    %v809 = vadd.f32 %v185, %v808
    %v810 = vpop.f32.mrb[0].mxu0
    %v811 = vpop.f32.mrb[0].mxu0
    %v812 = vadd.f32 %v185, %v811
    %v813 = vpop.f32.mrb[0].mxu0
    %814 = vmatprep.mubr.bf16.mxu0 0
    %815 = vmatmul.mubr.bf16.gmra.mrb[0].mxu0 %v122
    %v816 = vpop.f32.mrb[0].mxu0
    %v817 = vadd.f32 %v185, %v816
    %v818 = vpop.f32.mrb[0].mxu0
    %v819 = vpop.f32.mrb[0].mxu0
    %v820 = vadd.f32 %v185, %v819
    %v821 = vpop.f32.mrb[0].mxu0
    %822 = vmatprep.mubr.bf16.mxu0 0
    %823 = vmatmul.mubr.bf16.gmra.mrb[0].mxu0 %v123
    %v824 = vpop.f32.mrb[0].mxu0
    %v825 = vadd.f32 %v185, %v824
    %v826 = vpop.f32.mrb[0].mxu0
    %v827 = vpop.f32.mrb[0].mxu0
    %v828 = vadd.f32 %v185, %v827
    %v829 = vpop.f32.mrb[0].mxu0
    %830 = vmatprep.mubr.bf16.mxu0 0
    %831 = vmatmul.mubr.bf16.gmra.mrb[0].mxu0 %v124
    %v832 = vpop.f32.mrb[0].mxu0
    %v833 = vadd.f32 %v185, %v832
    %v834 = vpop.f32.mrb[0].mxu0
    %v835 = vpop.f32.mrb[0].mxu0
    %v836 = vadd.f32 %v185, %v835
    %v837 = vpop.f32.mrb[0].mxu0
    %838 = vmatprep.mubr.bf16.mxu0 0
    %839 = vmatmul.mubr.bf16.gmra.mrb[0].mxu0 %v125
    %v840 = vpop.f32.mrb[0].mxu0
    %v841 = vadd.f32 %v185, %v840
    %v842 = vpop.f32.mrb[0].mxu0
    %v843 = vpop.f32.mrb[0].mxu0
    %v844 = vadd.f32 %v185, %v843
    %v845 = vpop.f32.mrb[0].mxu0
    %846 = vmatprep.mubr.bf16.mxu0 0
    %847 = vmatmul.mubr.bf16.gmra.mrb[0].mxu0 %v126
    %v848 = vpop.f32.mrb[0].mxu0
    %v849 = vadd.f32 %v185, %v848
    %v850 = vpop.f32.mrb[0].mxu0
    %v851 = vpop.f32.mrb[0].mxu0
    %v852 = vadd.f32 %v185, %v851
    %v853 = vpop.f32.mrb[0].mxu0
    %854 = vmatprep.mubr.bf16.mxu0 0
    %855 = vmatmul.mubr.bf16.gmra.mrb[0].mxu0 %v127
    %v856 = vpop.f32.mrb[0].mxu0
    %v857 = vadd.f32 %v185, %v856
    %v858 = vpop.f32.mrb[0].mxu0
    %v859 = vpop.f32.mrb[0].mxu0
    %v860 = vadd.f32 %v185, %v859
    %v861 = vpop.f32.mrb[0].mxu0
    %862 = vmatprep.mubr.bf16.mxu0 0
    %863 = vmatmul.mubr.bf16.gmra.mrb[0].mxu0 %v128
    %v864 = vpop.f32.mrb[0].mxu0
    %v865 = vadd.f32 %v185, %v864
    %v866 = vpop.f32.mrb[0].mxu0
    %v867 = vpop.f32.mrb[0].mxu0
    %v868 = vadd.f32 %v185, %v867
    %v869 = vpop.f32.mrb[0].mxu0
    %870 = vmatprep.mubr.bf16.mxu0 0
    %871 = vmatmul.mubr.bf16.gmra.mrb[0].mxu0 %v129
    %v872 = vpop.f32.mrb[0].mxu0
    %v873 = vadd.f32 %v185, %v872
    %v874 = vpop.f32.mrb[0].mxu0
    %v875 = vpop.f32.mrb[0].mxu0
    %v876 = vadd.f32 %v185, %v875
    %v877 = vpop.f32.mrb[0].mxu0
    %878 = vmatprep.mubr.bf16.mxu0 0
    %879 = vmatmul.mubr.bf16.gmra.mrb[0].mxu0 %v130
    %v880 = vpop.f32.mrb[0].mxu0
    %v881 = vadd.f32 %v185, %v880
    %v882 = vpop.f32.mrb[0].mxu0
    %v883 = vpop.f32.mrb[0].mxu0
    %v884 = vadd.f32 %v185, %v883
    %v885 = vpop.f32.mrb[0].mxu0
    %886 = vmatprep.mubr.bf16.mxu0 0
    %887 = vmatmul.mubr.bf16.gmra.mrb[0].mxu0 %v131
    %v888 = vpop.f32.mrb[0].mxu0
    %v889 = vadd.f32 %v185, %v888
    %v890 = vpop.f32.mrb[0].mxu0
    %v891 = vpop.f32.mrb[0].mxu0
    %v892 = vadd.f32 %v185, %v891
    %v893 = vpop.f32.mrb[0].mxu0
    %894 = vmatprep.mubr.bf16.mxu0 0
    %895 = vmatmul.mubr.bf16.gmra.mrb[0].mxu0 %v132
    %v896 = vpop.f32.mrb[0].mxu0
    %v897 = vadd.f32 %v185, %v896
    %v898 = vpop.f32.mrb[0].mxu0
    %v899 = vpop.f32.mrb[0].mxu0
    %v900 = vadd.f32 %v185, %v899
    %v901 = vpop.f32.mrb[0].mxu0
    %902 = vmatprep.mubr.bf16.mxu0 0
    %903 = vmatmul.mubr.bf16.gmra.mrb[0].mxu0 %v133
    %v904 = vpop.f32.mrb[0].mxu0
    %v905 = vadd.f32 %v185, %v904
    %v906 = vpop.f32.mrb[0].mxu0
    %v907 = vpop.f32.mrb[0].mxu0
    %v908 = vadd.f32 %v185, %v907
    %v909 = vpop.f32.mrb[0].mxu0
    %910 = vmatprep.mubr.bf16.mxu0 0
    %911 = vmatmul.mubr.bf16.gmra.mrb[0].mxu0 %v134
    %v912 = vpop.f32.mrb[0].mxu0
    %v913 = vadd.f32 %v185, %v912
    %v914 = vpop.f32.mrb[0].mxu0
    %v915 = vpop.f32.mrb[0].mxu0
    %v916 = vadd.f32 %v185, %v915
    %v917 = vpop.f32.mrb[0].mxu0
    %918 = vmatprep.mubr.bf16.mxu0 0
    %919 = vmatmul.mubr.bf16.gmra.mrb[0].mxu0 %v135
    %v920 = vpop.f32.mrb[0].mxu0
    %v921 = vadd.f32 %v185, %v920
    %v922 = vpop.f32.mrb[0].mxu0
    %v923 = vpop.f32.mrb[0].mxu0
    %v924 = vadd.f32 %v185, %v923
    %v925 = vpop.f32.mrb[0].mxu0
    %926 = vmatprep.mubr.bf16.mxu0 0
    %927 = vmatmul.mubr.bf16.gmra.mrb[0].mxu0 %v136
    %v928 = vpop.f32.mrb[0].mxu0
    %v929 = vadd.f32 %v185, %v928
    %v930 = vpop.f32.mrb[0].mxu0
    %v931 = vpop.f32.mrb[0].mxu0
    %v932 = vadd.f32 %v185, %v931
    %v933 = vpop.f32.mrb[0].mxu0
    %934 = vmatprep.mubr.bf16.mxu0 0
    %935 = vmatmul.mubr.bf16.gmra.mrb[0].mxu0 %v137
    %v936 = vpop.f32.mrb[0].mxu0
    %v937 = vadd.f32 %v185, %v936
    %v938 = vpop.f32.mrb[0].mxu0
    %v939 = vpop.f32.mrb[0].mxu0
    %v940 = vadd.f32 %v185, %v939
    %v941 = vpop.f32.mrb[0].mxu0
    %942 = vmatprep.mubr.bf16.mxu0 0
    %943 = vmatmul.mubr.bf16.gmra.mrb[0].mxu0 %v138
    %v944 = vpop.f32.mrb[0].mxu0
    %v945 = vadd.f32 %v185, %v944
    %v946 = vpop.f32.mrb[0].mxu0
    %v947 = vpop.f32.mrb[0].mxu0
    %v948 = vadd.f32 %v185, %v947
    %v949 = vpop.f32.mrb[0].mxu0
    %950 = vmatprep.mubr.bf16.mxu0 0
    %951 = vmatmul.mubr.bf16.gmra.mrb[0].mxu0 %v139
    %v952 = vpop.f32.mrb[0].mxu0
    %v953 = vadd.f32 %v185, %v952
    %v954 = vpop.f32.mrb[0].mxu0
    %v955 = vpop.f32.mrb[0].mxu0
    %v956 = vadd.f32 %v185, %v955
    %v957 = vpop.f32.mrb[0].mxu0
    %958 = vdwg.mxu0
    %v959 = vpack.c.bf16 %v356, %v352
    %v960 = vpack.c.bf16 %v358, %v354
    %v961 = vpack.c.bf16 %v708, %v705
    %v962 = vpack.c.bf16 %v366, %v362
    %v963 = vpack.c.bf16 %v368, %v364
    %v964 = vpack.c.bf16 %v716, %v713
    %v965 = vpack.c.bf16 %v376, %v372
    %v966 = vpack.c.bf16 %v378, %v374
    %v967 = vpack.c.bf16 %v724, %v721
    %v968 = vpack.c.bf16 %v386, %v382
    %v969 = vpack.c.bf16 %v388, %v384
    %v970 = vpack.c.bf16 %v732, %v729
    %v971 = vpack.c.bf16 %v396, %v392
    %v972 = vpack.c.bf16 %v398, %v394
    %v973 = vpack.c.bf16 %v740, %v737
    %v974 = vpack.c.bf16 %v406, %v402
    %v975 = vpack.c.bf16 %v408, %v404
    %v976 = vpack.c.bf16 %v748, %v745
    %v977 = vpack.c.bf16 %v416, %v412
    %v978 = vpack.c.bf16 %v418, %v414
    %v979 = vpack.c.bf16 %v756, %v753
    %v980 = vpack.c.bf16 %v426, %v422
    %v981 = vpack.c.bf16 %v428, %v424
    %v982 = vpack.c.bf16 %v764, %v761
    %v983 = vpack.c.bf16 %v436, %v432
    %v984 = vpack.c.bf16 %v438, %v434
    %v985 = vpack.c.bf16 %v772, %v769
    %v986 = vpack.c.bf16 %v446, %v442
    %v987 = vpack.c.bf16 %v448, %v444
    %v988 = vpack.c.bf16 %v780, %v777
    %v989 = vpack.c.bf16 %v456, %v452
    %v990 = vpack.c.bf16 %v458, %v454
    %v991 = vpack.c.bf16 %v788, %v785
    %v992 = vpack.c.bf16 %v466, %v462
    %v993 = vpack.c.bf16 %v468, %v464
    %v994 = vpack.c.bf16 %v796, %v793
    %v995 = vpack.c.bf16 %v476, %v472
    %v996 = vpack.c.bf16 %v478, %v474
    %v997 = vpack.c.bf16 %v804, %v801
    %v998 = vpack.c.bf16 %v486, %v482
    %v999 = vpack.c.bf16 %v488, %v484
    %v1000 = vpack.c.bf16 %v812, %v809
    %v1001 = vpack.c.bf16 %v496, %v492
    %v1002 = vpack.c.bf16 %v498, %v494
    %v1003 = vpack.c.bf16 %v820, %v817
    %v1004 = vpack.c.bf16 %v506, %v502
    %v1005 = vpack.c.bf16 %v508, %v504
    %v1006 = vpack.c.bf16 %v828, %v825
    %v1007 = vpack.c.bf16 %v516, %v512
    %v1008 = vpack.c.bf16 %v518, %v514
    %v1009 = vpack.c.bf16 %v836, %v833
    %v1010 = vpack.c.bf16 %v526, %v522
    %v1011 = vpack.c.bf16 %v528, %v524
    %v1012 = vpack.c.bf16 %v844, %v841
    %v1013 = vpack.c.bf16 %v536, %v532
    %v1014 = vpack.c.bf16 %v538, %v534
    %v1015 = vpack.c.bf16 %v852, %v849
    %v1016 = vpack.c.bf16 %v546, %v542
    %v1017 = vpack.c.bf16 %v548, %v544
    %v1018 = vpack.c.bf16 %v860, %v857
    %v1019 = vpack.c.bf16 %v556, %v552
    %v1020 = vpack.c.bf16 %v558, %v554
    %v1021 = vpack.c.bf16 %v868, %v865
    %v1022 = vpack.c.bf16 %v566, %v562
    %v1023 = vpack.c.bf16 %v568, %v564
    %v1024 = vpack.c.bf16 %v876, %v873
    %v1025 = vpack.c.bf16 %v576, %v572
    %v1026 = vpack.c.bf16 %v578, %v574
    %v1027 = vpack.c.bf16 %v884, %v881
    %v1028 = vpack.c.bf16 %v586, %v582
    %v1029 = vpack.c.bf16 %v588, %v584
    %v1030 = vpack.c.bf16 %v892, %v889
    %v1031 = vpack.c.bf16 %v596, %v592
    %v1032 = vpack.c.bf16 %v598, %v594
    %v1033 = vpack.c.bf16 %v900, %v897
    %v1034 = vpack.c.bf16 %v606, %v602
    %v1035 = vpack.c.bf16 %v608, %v604
    %v1036 = vpack.c.bf16 %v908, %v905
    %v1037 = vpack.c.bf16 %v616, %v612
    %v1038 = vpack.c.bf16 %v618, %v614
    %v1039 = vpack.c.bf16 %v916, %v913
    %v1040 = vpack.c.bf16 %v626, %v622
    %v1041 = vpack.c.bf16 %v628, %v624
    %v1042 = vpack.c.bf16 %v924, %v921
    %v1043 = vpack.c.bf16 %v636, %v632
    %v1044 = vpack.c.bf16 %v638, %v634
    %v1045 = vpack.c.bf16 %v932, %v929
    %v1046 = vpack.c.bf16 %v646, %v642
    %v1047 = vpack.c.bf16 %v648, %v644
    %v1048 = vpack.c.bf16 %v940, %v937
    %v1049 = vpack.c.bf16 %v656, %v652
    %v1050 = vpack.c.bf16 %v658, %v654
    %v1051 = vpack.c.bf16 %v948, %v945
    %v1052 = vpack.c.bf16 %v666, %v662
    %v1053 = vpack.c.bf16 %v668, %v664
    %v1054 = vpack.c.bf16 %v956, %v953
    %v1151 = vunpack.c.l.b16 %v959
    %v1152 = vunpack.c.l.b16 %v960
    %v1153 = vunpack.c.l.b16 %v961
    %v1154 = vunpack.c.h.b16 %v959
    %v1155 = vunpack.c.h.b16 %v960
    %v1156 = vunpack.c.h.b16 %v961
    %v1157 = vunpack.c.l.b16 %v962
    %v1158 = vunpack.c.l.b16 %v963
    %v1159 = vunpack.c.l.b16 %v964
    %v1160 = vunpack.c.h.b16 %v962
    %v1161 = vunpack.c.h.b16 %v963
    %v1162 = vunpack.c.h.b16 %v964
    %v1163 = vunpack.c.l.b16 %v965
    %v1164 = vunpack.c.l.b16 %v966
    %v1165 = vunpack.c.l.b16 %v967
    %v1166 = vunpack.c.h.b16 %v965
    %v1167 = vunpack.c.h.b16 %v966
    %v1168 = vunpack.c.h.b16 %v967
    %v1169 = vunpack.c.l.b16 %v968
    %v1170 = vunpack.c.l.b16 %v969
    %v1171 = vunpack.c.l.b16 %v970
    %v1172 = vunpack.c.h.b16 %v968
    %v1173 = vunpack.c.h.b16 %v969
    %v1174 = vunpack.c.h.b16 %v970
    %v1175 = vunpack.c.l.b16 %v971
    %v1176 = vunpack.c.l.b16 %v972
    %v1177 = vunpack.c.l.b16 %v973
    %v1178 = vunpack.c.h.b16 %v971
    %v1179 = vunpack.c.h.b16 %v972
    %v1180 = vunpack.c.h.b16 %v973
    %v1181 = vunpack.c.l.b16 %v974
    %v1182 = vunpack.c.l.b16 %v975
    %v1183 = vunpack.c.l.b16 %v976
    %v1184 = vunpack.c.h.b16 %v974
    %v1185 = vunpack.c.h.b16 %v975
    %v1186 = vunpack.c.h.b16 %v976
    %v1187 = vunpack.c.l.b16 %v977
    %v1188 = vunpack.c.l.b16 %v978
    %v1189 = vunpack.c.l.b16 %v979
    %v1190 = vunpack.c.h.b16 %v977
    %v1191 = vunpack.c.h.b16 %v978
    %v1192 = vunpack.c.h.b16 %v979
    %v1193 = vunpack.c.l.b16 %v980
    %v1194 = vunpack.c.l.b16 %v981
    %v1195 = vunpack.c.l.b16 %v982
    %v1196 = vunpack.c.h.b16 %v980
    %v1197 = vunpack.c.h.b16 %v981
    %v1198 = vunpack.c.h.b16 %v982
    %v1199 = vunpack.c.l.b16 %v983
    %v1200 = vunpack.c.l.b16 %v984
    %v1201 = vunpack.c.l.b16 %v985
    %v1202 = vunpack.c.h.b16 %v983
    %v1203 = vunpack.c.h.b16 %v984
    %v1204 = vunpack.c.h.b16 %v985
    %v1205 = vunpack.c.l.b16 %v986
    %v1206 = vunpack.c.l.b16 %v987
    %v1207 = vunpack.c.l.b16 %v988
    %v1208 = vunpack.c.h.b16 %v986
    %v1209 = vunpack.c.h.b16 %v987
    %v1210 = vunpack.c.h.b16 %v988
    %v1211 = vunpack.c.l.b16 %v989
    %v1212 = vunpack.c.l.b16 %v990
    %v1213 = vunpack.c.l.b16 %v991
    %v1214 = vunpack.c.h.b16 %v989
    %v1215 = vunpack.c.h.b16 %v990
    %v1216 = vunpack.c.h.b16 %v991
    %v1217 = vunpack.c.l.b16 %v992
    %v1218 = vunpack.c.l.b16 %v993
    %v1219 = vunpack.c.l.b16 %v994
    %v1220 = vunpack.c.h.b16 %v992
    %v1221 = vunpack.c.h.b16 %v993
    %v1222 = vunpack.c.h.b16 %v994
    %v1223 = vunpack.c.l.b16 %v995
    %v1224 = vunpack.c.l.b16 %v996
    %v1225 = vunpack.c.l.b16 %v997
    %v1226 = vunpack.c.h.b16 %v995
    %v1227 = vunpack.c.h.b16 %v996
    %v1228 = vunpack.c.h.b16 %v997
    %v1229 = vunpack.c.l.b16 %v998
    %v1230 = vunpack.c.l.b16 %v999
    %v1231 = vunpack.c.l.b16 %v1000
    %v1232 = vunpack.c.h.b16 %v998
    %v1233 = vunpack.c.h.b16 %v999
    %v1234 = vunpack.c.h.b16 %v1000
    %v1235 = vunpack.c.l.b16 %v1001
    %v1236 = vunpack.c.l.b16 %v1002
    %v1237 = vunpack.c.l.b16 %v1003
    %v1238 = vunpack.c.h.b16 %v1001
    %v1239 = vunpack.c.h.b16 %v1002
    %v1240 = vunpack.c.h.b16 %v1003
    %v1241 = vunpack.c.l.b16 %v1004
    %v1242 = vunpack.c.l.b16 %v1005
    %v1243 = vunpack.c.l.b16 %v1006
    %v1244 = vunpack.c.h.b16 %v1004
    %v1245 = vunpack.c.h.b16 %v1005
    %v1246 = vunpack.c.h.b16 %v1006
    %v1247 = vunpack.c.l.b16 %v1007
    %v1248 = vunpack.c.l.b16 %v1008
    %v1249 = vunpack.c.l.b16 %v1009
    %v1250 = vunpack.c.h.b16 %v1007
    %v1251 = vunpack.c.h.b16 %v1008
    %v1252 = vunpack.c.h.b16 %v1009
    %v1253 = vunpack.c.l.b16 %v1010
    %v1254 = vunpack.c.l.b16 %v1011
    %v1255 = vunpack.c.l.b16 %v1012
    %v1256 = vunpack.c.h.b16 %v1010
    %v1257 = vunpack.c.h.b16 %v1011
    %v1258 = vunpack.c.h.b16 %v1012
    %v1259 = vunpack.c.l.b16 %v1013
    %v1260 = vunpack.c.l.b16 %v1014
    %v1261 = vunpack.c.l.b16 %v1015
    %v1262 = vunpack.c.h.b16 %v1013
    %v1263 = vunpack.c.h.b16 %v1014
    %v1264 = vunpack.c.h.b16 %v1015
    %v1265 = vunpack.c.l.b16 %v1016
    %v1266 = vunpack.c.l.b16 %v1017
    %v1267 = vunpack.c.l.b16 %v1018
    %v1268 = vunpack.c.h.b16 %v1016
    %v1269 = vunpack.c.h.b16 %v1017
    %v1270 = vunpack.c.h.b16 %v1018
    %v1271 = vunpack.c.l.b16 %v1019
    %v1272 = vunpack.c.l.b16 %v1020
    %v1273 = vunpack.c.l.b16 %v1021
    %v1274 = vunpack.c.h.b16 %v1019
    %v1275 = vunpack.c.h.b16 %v1020
    %v1276 = vunpack.c.h.b16 %v1021
    %v1277 = vunpack.c.l.b16 %v1022
    %v1278 = vunpack.c.l.b16 %v1023
    %v1279 = vunpack.c.l.b16 %v1024
    %v1280 = vunpack.c.h.b16 %v1022
    %v1281 = vunpack.c.h.b16 %v1023
    %v1282 = vunpack.c.h.b16 %v1024
    %v1283 = vunpack.c.l.b16 %v1025
    %v1284 = vunpack.c.l.b16 %v1026
    %v1285 = vunpack.c.l.b16 %v1027
    %v1286 = vunpack.c.h.b16 %v1025
    %v1287 = vunpack.c.h.b16 %v1026
    %v1288 = vunpack.c.h.b16 %v1027
    %v1289 = vunpack.c.l.b16 %v1028
    %v1290 = vunpack.c.l.b16 %v1029
    %v1291 = vunpack.c.l.b16 %v1030
    %v1292 = vunpack.c.h.b16 %v1028
    %v1293 = vunpack.c.h.b16 %v1029
    %v1294 = vunpack.c.h.b16 %v1030
    %v1295 = vunpack.c.l.b16 %v1031
    %v1296 = vunpack.c.l.b16 %v1032
    %v1297 = vunpack.c.l.b16 %v1033
    %v1298 = vunpack.c.h.b16 %v1031
    %v1299 = vunpack.c.h.b16 %v1032
    %v1300 = vunpack.c.h.b16 %v1033
    %v1301 = vunpack.c.l.b16 %v1034
    %v1302 = vunpack.c.l.b16 %v1035
    %v1303 = vunpack.c.l.b16 %v1036
    %v1304 = vunpack.c.h.b16 %v1034
    %v1305 = vunpack.c.h.b16 %v1035
    %v1306 = vunpack.c.h.b16 %v1036
    %v1307 = vunpack.c.l.b16 %v1037
    %v1308 = vunpack.c.l.b16 %v1038
    %v1309 = vunpack.c.l.b16 %v1039
    %v1310 = vunpack.c.h.b16 %v1037
    %v1311 = vunpack.c.h.b16 %v1038
    %v1312 = vunpack.c.h.b16 %v1039
    %v1313 = vunpack.c.l.b16 %v1040
    %v1314 = vunpack.c.l.b16 %v1041
    %v1315 = vunpack.c.l.b16 %v1042
    %v1316 = vunpack.c.h.b16 %v1040
    %v1317 = vunpack.c.h.b16 %v1041
    %v1318 = vunpack.c.h.b16 %v1042
    %v1319 = vunpack.c.l.b16 %v1043
    %v1320 = vunpack.c.l.b16 %v1044
    %v1321 = vunpack.c.l.b16 %v1045
    %v1322 = vunpack.c.h.b16 %v1043
    %v1323 = vunpack.c.h.b16 %v1044
    %v1324 = vunpack.c.h.b16 %v1045
    %v1325 = vunpack.c.l.b16 %v1046
    %v1326 = vunpack.c.l.b16 %v1047
    %v1327 = vunpack.c.l.b16 %v1048
    %v1328 = vunpack.c.h.b16 %v1046
    %v1329 = vunpack.c.h.b16 %v1047
    %v1330 = vunpack.c.h.b16 %v1048
    %v1331 = vunpack.c.l.b16 %v1049
    %v1332 = vunpack.c.l.b16 %v1050
    %v1333 = vunpack.c.l.b16 %v1051
    %v1334 = vunpack.c.h.b16 %v1049
    %v1335 = vunpack.c.h.b16 %v1050
    %v1336 = vunpack.c.h.b16 %v1051
    %v1337 = vunpack.c.l.b16 %v1052
    %v1338 = vunpack.c.l.b16 %v1053
    %v1339 = vunpack.c.l.b16 %v1054
    %v1340 = vunpack.c.h.b16 %v1052
    %v1341 = vunpack.c.h.b16 %v1053
    %v1342 = vunpack.c.h.b16 %v1054
    %v1343 = vpack.c.b16 %v1152, %v1151
    %v1344 = vpack.c.b16 %v1153, %v1153
    %v1345 = vpack.c.b16 %v1155, %v1154
    %v1346 = vpack.c.b16 %v1156, %v1156
    %v1347 = vpack.c.b16 %v1158, %v1157
    %v1348 = vpack.c.b16 %v1159, %v1159
    %v1349 = vpack.c.b16 %v1161, %v1160
    %v1350 = vpack.c.b16 %v1162, %v1162
    %v1351 = vpack.c.b16 %v1164, %v1163
    %v1352 = vpack.c.b16 %v1165, %v1165
    %v1353 = vpack.c.b16 %v1167, %v1166
    %v1354 = vpack.c.b16 %v1168, %v1168
    %v1355 = vpack.c.b16 %v1170, %v1169
    %v1356 = vpack.c.b16 %v1171, %v1171
    %v1357 = vpack.c.b16 %v1173, %v1172
    %v1358 = vpack.c.b16 %v1174, %v1174
    %v1359 = vpack.c.b16 %v1176, %v1175
    %v1360 = vpack.c.b16 %v1177, %v1177
    %v1361 = vpack.c.b16 %v1179, %v1178
    %v1362 = vpack.c.b16 %v1180, %v1180
    %v1363 = vpack.c.b16 %v1182, %v1181
    %v1364 = vpack.c.b16 %v1183, %v1183
    %v1365 = vpack.c.b16 %v1185, %v1184
    %v1366 = vpack.c.b16 %v1186, %v1186
    %v1367 = vpack.c.b16 %v1188, %v1187
    %v1368 = vpack.c.b16 %v1189, %v1189
    %v1369 = vpack.c.b16 %v1191, %v1190
    %v1370 = vpack.c.b16 %v1192, %v1192
    %v1371 = vpack.c.b16 %v1194, %v1193
    %v1372 = vpack.c.b16 %v1195, %v1195
    %v1373 = vpack.c.b16 %v1197, %v1196
    %v1374 = vpack.c.b16 %v1198, %v1198
    %v1375 = vpack.c.b16 %v1200, %v1199
    %v1376 = vpack.c.b16 %v1201, %v1201
    %v1377 = vpack.c.b16 %v1203, %v1202
    %v1378 = vpack.c.b16 %v1204, %v1204
    %v1379 = vpack.c.b16 %v1206, %v1205
    %v1380 = vpack.c.b16 %v1207, %v1207
    %v1381 = vpack.c.b16 %v1209, %v1208
    %v1382 = vpack.c.b16 %v1210, %v1210
    %v1383 = vpack.c.b16 %v1212, %v1211
    %v1384 = vpack.c.b16 %v1213, %v1213
    %v1385 = vpack.c.b16 %v1215, %v1214
    %v1386 = vpack.c.b16 %v1216, %v1216
    %v1387 = vpack.c.b16 %v1218, %v1217
    %v1388 = vpack.c.b16 %v1219, %v1219
    %v1389 = vpack.c.b16 %v1221, %v1220
    %v1390 = vpack.c.b16 %v1222, %v1222
    %v1391 = vpack.c.b16 %v1224, %v1223
    %v1392 = vpack.c.b16 %v1225, %v1225
    %v1393 = vpack.c.b16 %v1227, %v1226
    %v1394 = vpack.c.b16 %v1228, %v1228
    %v1395 = vpack.c.b16 %v1230, %v1229
    %v1396 = vpack.c.b16 %v1231, %v1231
    %v1397 = vpack.c.b16 %v1233, %v1232
    %v1398 = vpack.c.b16 %v1234, %v1234
    %v1399 = vpack.c.b16 %v1236, %v1235
    %v1400 = vpack.c.b16 %v1237, %v1237
    %v1401 = vpack.c.b16 %v1239, %v1238
    %v1402 = vpack.c.b16 %v1240, %v1240
    %v1403 = vpack.c.b16 %v1242, %v1241
    %v1404 = vpack.c.b16 %v1243, %v1243
    %v1405 = vpack.c.b16 %v1245, %v1244
    %v1406 = vpack.c.b16 %v1246, %v1246
    %v1407 = vpack.c.b16 %v1248, %v1247
    %v1408 = vpack.c.b16 %v1249, %v1249
    %v1409 = vpack.c.b16 %v1251, %v1250
    %v1410 = vpack.c.b16 %v1252, %v1252
    %v1411 = vpack.c.b16 %v1254, %v1253
    %v1412 = vpack.c.b16 %v1255, %v1255
    %v1413 = vpack.c.b16 %v1257, %v1256
    %v1414 = vpack.c.b16 %v1258, %v1258
    %v1415 = vpack.c.b16 %v1260, %v1259
    %v1416 = vpack.c.b16 %v1261, %v1261
    %v1417 = vpack.c.b16 %v1263, %v1262
    %v1418 = vpack.c.b16 %v1264, %v1264
    %v1419 = vpack.c.b16 %v1266, %v1265
    %v1420 = vpack.c.b16 %v1267, %v1267
    %v1421 = vpack.c.b16 %v1269, %v1268
    %v1422 = vpack.c.b16 %v1270, %v1270
    %v1423 = vpack.c.b16 %v1272, %v1271
    %v1424 = vpack.c.b16 %v1273, %v1273
    %v1425 = vpack.c.b16 %v1275, %v1274
    %v1426 = vpack.c.b16 %v1276, %v1276
    %v1427 = vpack.c.b16 %v1278, %v1277
    %v1428 = vpack.c.b16 %v1279, %v1279
    %v1429 = vpack.c.b16 %v1281, %v1280
    %v1430 = vpack.c.b16 %v1282, %v1282
    %v1431 = vpack.c.b16 %v1284, %v1283
    %v1432 = vpack.c.b16 %v1285, %v1285
    %v1433 = vpack.c.b16 %v1287, %v1286
    %v1434 = vpack.c.b16 %v1288, %v1288
    %v1435 = vpack.c.b16 %v1290, %v1289
    %v1436 = vpack.c.b16 %v1291, %v1291
    %v1437 = vpack.c.b16 %v1293, %v1292
    %v1438 = vpack.c.b16 %v1294, %v1294
    %v1439 = vpack.c.b16 %v1296, %v1295
    %v1440 = vpack.c.b16 %v1297, %v1297
    %v1441 = vpack.c.b16 %v1299, %v1298
    %v1442 = vpack.c.b16 %v1300, %v1300
    %v1443 = vpack.c.b16 %v1302, %v1301
    %v1444 = vpack.c.b16 %v1303, %v1303
    %v1445 = vpack.c.b16 %v1305, %v1304
    %v1446 = vpack.c.b16 %v1306, %v1306
    %v1447 = vpack.c.b16 %v1308, %v1307
    %v1448 = vpack.c.b16 %v1309, %v1309
    %v1449 = vpack.c.b16 %v1311, %v1310
    %v1450 = vpack.c.b16 %v1312, %v1312
    %v1451 = vpack.c.b16 %v1314, %v1313
    %v1452 = vpack.c.b16 %v1315, %v1315
    %v1453 = vpack.c.b16 %v1317, %v1316
    %v1454 = vpack.c.b16 %v1318, %v1318
    %v1455 = vpack.c.b16 %v1320, %v1319
    %v1456 = vpack.c.b16 %v1321, %v1321
    %v1457 = vpack.c.b16 %v1323, %v1322
    %v1458 = vpack.c.b16 %v1324, %v1324
    %v1459 = vpack.c.b16 %v1326, %v1325
    %v1460 = vpack.c.b16 %v1327, %v1327
    %v1461 = vpack.c.b16 %v1329, %v1328
    %v1462 = vpack.c.b16 %v1330, %v1330
    %v1463 = vpack.c.b16 %v1332, %v1331
    %v1464 = vpack.c.b16 %v1333, %v1333
    %v1465 = vpack.c.b16 %v1335, %v1334
    %v1466 = vpack.c.b16 %v1336, %v1336
    %v1467 = vpack.c.b16 %v1338, %v1337
    %v1468 = vpack.c.b16 %v1339, %v1339
    %v1469 = vpack.c.b16 %v1341, %v1340
    %v1470 = vpack.c.b16 %v1342, %v1342
    %1599 = vst [vmem:[#allocation7] sm:$0xff] %v1343
    %1600 = vst [vmem:[#allocation7 + $0x8] sm:$0xf] %v1344
    %1601 = vst [vmem:[#allocation7 + $0xc] sm:$0xff] %v1345
    %1602 = vst [vmem:[#allocation7 + $0x14] sm:$0xf] %v1346
    %1603 = vst [vmem:[#allocation7 + $0x18] sm:$0xff] %v1347
    %1604 = vst [vmem:[#allocation7 + $0x20] sm:$0xf] %v1348
    %1605 = vst [vmem:[#allocation7 + $0x24] sm:$0xff] %v1349
    %1606 = vst [vmem:[#allocation7 + $0x2c] sm:$0xf] %v1350
    %1607 = vst [vmem:[#allocation7 + $0x30] sm:$0xff] %v1351
    %1608 = vst [vmem:[#allocation7 + $0x38] sm:$0xf] %v1352
    %1609 = vst [vmem:[#allocation7 + $0x3c] sm:$0xff] %v1353
    %1610 = vst [vmem:[#allocation7 + $0x44] sm:$0xf] %v1354
    %1611 = vst [vmem:[#allocation7 + $0x48] sm:$0xff] %v1355
    %1612 = vst [vmem:[#allocation7 + $0x50] sm:$0xf] %v1356
    %1613 = vst [vmem:[#allocation7 + $0x54] sm:$0xff] %v1357
    %1614 = vst [vmem:[#allocation7 + $0x5c] sm:$0xf] %v1358
    %1615 = vst [vmem:[#allocation7 + $0x60] sm:$0xff] %v1359
    %1616 = vst [vmem:[#allocation7 + $0x68] sm:$0xf] %v1360
    %1617 = vst [vmem:[#allocation7 + $0x6c] sm:$0xff] %v1361
    %1618 = vst [vmem:[#allocation7 + $0x74] sm:$0xf] %v1362
    %1619 = vst [vmem:[#allocation7 + $0x78] sm:$0xff] %v1363
    %1620 = vst [vmem:[#allocation7 + $0x80] sm:$0xf] %v1364
    %1621 = vst [vmem:[#allocation7 + $0x84] sm:$0xff] %v1365
    %1622 = vst [vmem:[#allocation7 + $0x8c] sm:$0xf] %v1366
    %1623 = vst [vmem:[#allocation7 + $0x90] sm:$0xff] %v1367
    %1624 = vst [vmem:[#allocation7 + $0x98] sm:$0xf] %v1368
    %1625 = vst [vmem:[#allocation7 + $0x9c] sm:$0xff] %v1369
    %1626 = vst [vmem:[#allocation7 + $0xa4] sm:$0xf] %v1370
    %1627 = vst [vmem:[#allocation7 + $0xa8] sm:$0xff] %v1371
    %1628 = vst [vmem:[#allocation7 + $0xb0] sm:$0xf] %v1372
    %1629 = vst [vmem:[#allocation7 + $0xb4] sm:$0xff] %v1373
    %1630 = vst [vmem:[#allocation7 + $0xbc] sm:$0xf] %v1374
    %1631 = vst [vmem:[#allocation7 + $0xc0] sm:$0xff] %v1375
    %1632 = vst [vmem:[#allocation7 + $0xc8] sm:$0xf] %v1376
    %1633 = vst [vmem:[#allocation7 + $0xcc] sm:$0xff] %v1377
    %1634 = vst [vmem:[#allocation7 + $0xd4] sm:$0xf] %v1378
    %1635 = vst [vmem:[#allocation7 + $0xd8] sm:$0xff] %v1379
    %1636 = vst [vmem:[#allocation7 + $0xe0] sm:$0xf] %v1380
    %1637 = vst [vmem:[#allocation7 + $0xe4] sm:$0xff] %v1381
    %1638 = vst [vmem:[#allocation7 + $0xec] sm:$0xf] %v1382
    %1639 = vst [vmem:[#allocation7 + $0xf0] sm:$0xff] %v1383
    %1640 = vst [vmem:[#allocation7 + $0xf8] sm:$0xf] %v1384
    %1641 = vst [vmem:[#allocation7 + $0xfc] sm:$0xff] %v1385
    %1642 = vst [vmem:[#allocation7 + $0x104] sm:$0xf] %v1386
    %1643 = vst [vmem:[#allocation7 + $0x108] sm:$0xff] %v1387
    %1644 = vst [vmem:[#allocation7 + $0x110] sm:$0xf] %v1388
    %1645 = vst [vmem:[#allocation7 + $0x114] sm:$0xff] %v1389
    %1646 = vst [vmem:[#allocation7 + $0x11c] sm:$0xf] %v1390
    %1647 = vst [vmem:[#allocation7 + $0x120] sm:$0xff] %v1391
    %1648 = vst [vmem:[#allocation7 + $0x128] sm:$0xf] %v1392
    %1649 = vst [vmem:[#allocation7 + $0x12c] sm:$0xff] %v1393
    %1650 = vst [vmem:[#allocation7 + $0x134] sm:$0xf] %v1394
    %1651 = vst [vmem:[#allocation7 + $0x138] sm:$0xff] %v1395
    %1652 = vst [vmem:[#allocation7 + $0x140] sm:$0xf] %v1396
    %1653 = vst [vmem:[#allocation7 + $0x144] sm:$0xff] %v1397
    %1654 = vst [vmem:[#allocation7 + $0x14c] sm:$0xf] %v1398
    %1655 = vst [vmem:[#allocation7 + $0x150] sm:$0xff] %v1399
    %1656 = vst [vmem:[#allocation7 + $0x158] sm:$0xf] %v1400
    %1657 = vst [vmem:[#allocation7 + $0x15c] sm:$0xff] %v1401
    %1658 = vst [vmem:[#allocation7 + $0x164] sm:$0xf] %v1402
    %1659 = vst [vmem:[#allocation7 + $0x168] sm:$0xff] %v1403
    %1660 = vst [vmem:[#allocation7 + $0x170] sm:$0xf] %v1404
    %1661 = vst [vmem:[#allocation7 + $0x174] sm:$0xff] %v1405
    %1662 = vst [vmem:[#allocation7 + $0x17c] sm:$0xf] %v1406
    %1663 = vst [vmem:[#allocation7 + $0x180] sm:$0xff] %v1407
    %1664 = vst [vmem:[#allocation7 + $0x188] sm:$0xf] %v1408
    %1665 = vst [vmem:[#allocation7 + $0x18c] sm:$0xff] %v1409
    %1666 = vst [vmem:[#allocation7 + $0x194] sm:$0xf] %v1410
    %1667 = vst [vmem:[#allocation7 + $0x198] sm:$0xff] %v1411
    %1668 = vst [vmem:[#allocation7 + $0x1a0] sm:$0xf] %v1412
    %1669 = vst [vmem:[#allocation7 + $0x1a4] sm:$0xff] %v1413
    %1670 = vst [vmem:[#allocation7 + $0x1ac] sm:$0xf] %v1414
    %1671 = vst [vmem:[#allocation7 + $0x1b0] sm:$0xff] %v1415
    %1672 = vst [vmem:[#allocation7 + $0x1b8] sm:$0xf] %v1416
    %1673 = vst [vmem:[#allocation7 + $0x1bc] sm:$0xff] %v1417
    %1674 = vst [vmem:[#allocation7 + $0x1c4] sm:$0xf] %v1418
    %1675 = vst [vmem:[#allocation7 + $0x1c8] sm:$0xff] %v1419
    %1676 = vst [vmem:[#allocation7 + $0x1d0] sm:$0xf] %v1420
    %1677 = vst [vmem:[#allocation7 + $0x1d4] sm:$0xff] %v1421
    %1678 = vst [vmem:[#allocation7 + $0x1dc] sm:$0xf] %v1422
    %1679 = vst [vmem:[#allocation7 + $0x1e0] sm:$0xff] %v1423
    %1680 = vst [vmem:[#allocation7 + $0x1e8] sm:$0xf] %v1424
    %1681 = vst [vmem:[#allocation7 + $0x1ec] sm:$0xff] %v1425
    %1682 = vst [vmem:[#allocation7 + $0x1f4] sm:$0xf] %v1426
    %1683 = vst [vmem:[#allocation7 + $0x1f8] sm:$0xff] %v1427
    %1684 = vst [vmem:[#allocation7 + $0x200] sm:$0xf] %v1428
    %1685 = vst [vmem:[#allocation7 + $0x204] sm:$0xff] %v1429
    %1686 = vst [vmem:[#allocation7 + $0x20c] sm:$0xf] %v1430
    %1687 = vst [vmem:[#allocation7 + $0x210] sm:$0xff] %v1431
    %1688 = vst [vmem:[#allocation7 + $0x218] sm:$0xf] %v1432
    %1689 = vst [vmem:[#allocation7 + $0x21c] sm:$0xff] %v1433
    %1690 = vst [vmem:[#allocation7 + $0x224] sm:$0xf] %v1434
    %1691 = vst [vmem:[#allocation7 + $0x228] sm:$0xff] %v1435
    %1692 = vst [vmem:[#allocation7 + $0x230] sm:$0xf] %v1436
    %1693 = vst [vmem:[#allocation7 + $0x234] sm:$0xff] %v1437
    %1694 = vst [vmem:[#allocation7 + $0x23c] sm:$0xf] %v1438
    %1695 = vst [vmem:[#allocation7 + $0x240] sm:$0xff] %v1439
    %1696 = vst [vmem:[#allocation7 + $0x248] sm:$0xf] %v1440
    %1697 = vst [vmem:[#allocation7 + $0x24c] sm:$0xff] %v1441
    %1698 = vst [vmem:[#allocation7 + $0x254] sm:$0xf] %v1442
    %1699 = vst [vmem:[#allocation7 + $0x258] sm:$0xff] %v1443
    %1700 = vst [vmem:[#allocation7 + $0x260] sm:$0xf] %v1444
    %1701 = vst [vmem:[#allocation7 + $0x264] sm:$0xff] %v1445
    %1702 = vst [vmem:[#allocation7 + $0x26c] sm:$0xf] %v1446
    %1703 = vst [vmem:[#allocation7 + $0x270] sm:$0xff] %v1447
    %1704 = vst [vmem:[#allocation7 + $0x278] sm:$0xf] %v1448
    %1705 = vst [vmem:[#allocation7 + $0x27c] sm:$0xff] %v1449
    %1706 = vst [vmem:[#allocation7 + $0x284] sm:$0xf] %v1450
    %1707 = vst [vmem:[#allocation7 + $0x288] sm:$0xff] %v1451
    %1708 = vst [vmem:[#allocation7 + $0x290] sm:$0xf] %v1452
    %1709 = vst [vmem:[#allocation7 + $0x294] sm:$0xff] %v1453
    %1710 = vst [vmem:[#allocation7 + $0x29c] sm:$0xf] %v1454
    %1711 = vst [vmem:[#allocation7 + $0x2a0] sm:$0xff] %v1455
    %1712 = vst [vmem:[#allocation7 + $0x2a8] sm:$0xf] %v1456
    %1713 = vst [vmem:[#allocation7 + $0x2ac] sm:$0xff] %v1457
    %1714 = vst [vmem:[#allocation7 + $0x2b4] sm:$0xf] %v1458
    %1715 = vst [vmem:[#allocation7 + $0x2b8] sm:$0xff] %v1459
    %1716 = vst [vmem:[#allocation7 + $0x2c0] sm:$0xf] %v1460
    %1717 = vst [vmem:[#allocation7 + $0x2c4] sm:$0xff] %v1461
    %1718 = vst [vmem:[#allocation7 + $0x2cc] sm:$0xf] %v1462
    %1719 = vst [vmem:[#allocation7 + $0x2d0] sm:$0xff] %v1463
    %1720 = vst [vmem:[#allocation7 + $0x2d8] sm:$0xf] %v1464
    %1721 = vst [vmem:[#allocation7 + $0x2dc] sm:$0xff] %v1465
    %1722 = vst [vmem:[#allocation7 + $0x2e4] sm:$0xf] %v1466
    %1723 = vst [vmem:[#allocation7 + $0x2e8] sm:$0xff] %v1467
    %1724 = vst [vmem:[#allocation7 + $0x2f0] sm:$0xf] %v1468
    %1725 = vst [vmem:[#allocation7 + $0x2f4] sm:$0xff] %v1469
    %1726 = vst [vmem:[#allocation7 + $0x2fc] sm:$0xf] %v1470
    // Predicated region
    $region22: #{tpu_custom_call.1} parent=1 // pred_check
      _
    $region23: #{tpu_custom_call.1} parent=1 // pred_check_branch
      %1728 = sbr.rel (0) target = $region25
    $region24: #{tpu_custom_call.1} parent=1 // pred_region
      %s1730 = ssub.s32 12288, 12288
      %1731 = vsyncadd [#allocation4], %s1730
      %s1732 = sshll.u32 [#allocation7], 4
      %s1733 = int_to_ptr.vmem [resolvable:$true] %s1732
      %1738 = dma.vmem_to_hbm [thread:$0]  %s1733, 12288, %s3, [#allocation4], 192, 192, 12
    $region25: #{tpu_custom_call.1} parent=1 // pred_fallthru
      _
    // Predicated region
    $region26: #{tpu_custom_call.1} parent=1 // pred_check
      _
    $region27: #{tpu_custom_call.1} parent=1 // pred_check_branch
      %1740 = sbr.rel (0) target = $region29
    $region28: #{tpu_custom_call.1} parent=1 // pred_region
      %1741 = dma.done [#allocation4], 12288
    $region29: #{tpu_custom_call.1} parent=1 // pred_fallthru
      _
    %1742 = vsyncpa [#allocation3], 1
    %1743 = vsyncpa [#allocation6], 1
    %1744 = vsyncpa [#allocation4], 1

</llo_original>
